<compile_context>
chip_gen: v7x
topology: tpu7x:2x2x1
jax: 0.10.0
libtpu: 0.0.40
codegen_flags: <defaults>
</compile_context>

<pallas_src>
import numpy as np
import jax
import jax.numpy as jnp
from jax.experimental import pallas as pl
from jax.experimental.pallas import tpu as pltpu

ALPHA = 0.5
TARGET_HW = 224
_MEAN = (0.4914, 0.4822, 0.4465)
_STD = (0.2023, 0.1994, 0.201)
# The reference module's compute dtype is the nn.Linear(1,1) device_flag dtype == float32;
# we compute in f32 inside the kernel and cast the output back to augment_images.dtype.


def _bilinear_resize_matrix(in_size: int, out_size: int) -> np.ndarray:
    """Half-pixel-center bilinear resize weights, shape (out_size, in_size).

    resized = W @ x  along one spatial axis.  Edge samples clamp (weights accumulate).
    """
    # TODO(synk): torchvision Resize(antialias=True) parity when *down*scaling.
    scale = in_size / out_size
    src = (np.arange(out_size, dtype=np.float64) + 0.5) * scale - 0.5
    lo = np.floor(src)
    frac = src - lo
    lo_i = np.clip(lo, 0, in_size - 1).astype(np.int64)
    hi_i = np.clip(lo + 1, 0, in_size - 1).astype(np.int64)
    w = np.zeros((out_size, in_size), dtype=np.float64)
    rows = np.arange(out_size)
    np.add.at(w, (rows, lo_i), 1.0 - frac)
    np.add.at(w, (rows, hi_i), frac)
    return w.astype(np.float32)


def _mixup_kernel(index_ref, params_ref, aug_ref, rh_ref, rwt_ref, img_ref, out_ref):
    """One grid step == one batch element.

    index_ref  : (B,)   i32 SMEM permutation (consumed only by img_ref's index_map)
    params_ref : (2C+1,) f32 SMEM: [lam/std_c ..., -lam*mean_c/std_c ..., 1-lam]
    aug_ref    : (1, C, h, w)      raw (small) augment image for batch i
    rh_ref     : (224, h) f32      row-resize weights
    rwt_ref    : (w, 224) f32      column-resize weights (flip already folded in)
    img_ref    : (1, C, 224, 224)  images[index[i]]  (native dtype, permuted via index_map)
    out_ref    : (1, C, 224, 224)  mixed output for batch i, target dtype
    """
    del index_ref
    num_c = aug_ref.shape[1]
    one_minus_lam = params_ref[2 * num_c]
    rh = rh_ref[...]      # (224, h)
    rwt = rwt_ref[...]    # (w, 224)
    # Small static channel count -> unrolled Python loop.
    for c in range(num_c):
        a_c = params_ref[c]            # lam / std_c
        b_c = params_ref[num_c + c]    # -lam * mean_c / std_c
        aug_c = aug_ref[0, c, :, :].astype(jnp.float32)              # (h, w)
        # Separable bilinear resize (+flip) on the MXU; hides under the img DMA.
        tmp = jnp.dot(aug_c, rwt, preferred_element_type=jnp.float32)    # (h, 224)
        resized = jnp.dot(rh, tmp, preferred_element_type=jnp.float32)   # (224, 224)
        img_c = img_ref[0, c, :, :].astype(jnp.float32)
        # Normalize folded into the mix: lam*(x-mean)/std + (1-lam)*img
        mixed = a_c * resized + one_minus_lam * img_c + b_c
        out_ref[0, c, :, :] = mixed.astype(out_ref.dtype)


def mixup_forward(images, augment_images, key, alpha=ALPHA):
    """images: (B, C, 224, 224); augment_images: (B, C, h, w) -> mixed (B, C, 224, 224)."""
    target_dtype = augment_images.dtype
    B, C, h_in, w_in = augment_images.shape
    assert C == len(_MEAN), "Normalize in the reference module is defined for 3 channels"
    assert images.shape == (B, C, TARGET_HW, TARGET_HW)

    k_flip, k_beta, k_perm = jax.random.split(key, 3)

    # ---- glue (tiny / RNG only) ----
    # Resize weight matrices; RandomHorizontalFlip == reversing the output rows of R_w,
    # selected on the tiny matrix instead of the full-resolution image.
    r_h = jnp.asarray(_bilinear_resize_matrix(h_in, TARGET_HW))        # (224, h)
    r_w = jnp.asarray(_bilinear_resize_matrix(w_in, TARGET_HW))        # (224, w)
    do_flip = jax.random.bernoulli(k_flip)                             # p = 0.5 (whole batch)
    r_wt = jnp.where(do_flip, r_w[::-1], r_w).T                        # (w, 224)

    # lam ~ Beta(alpha, alpha); lam = max(lam, 1 - lam)
    lam = jax.random.beta(k_beta, alpha, alpha).astype(jnp.float32)
    lam = jnp.where(lam < 0.5, 1.0 - lam, lam)
    mean = jnp.asarray(_MEAN, jnp.float32)
    std = jnp.asarray(_STD, jnp.float32)
    # Normalize folded into the mix: lam*(x-mean)/std = (lam/std)*x + (-lam*mean/std)
    params = jnp.concatenate(
        [lam / std, -lam * mean / std, (1.0 - lam).reshape(1)]
    ).astype(jnp.float32)                                              # (2C+1,)

    index = jax.random.permutation(k_perm, B).astype(jnp.int32)        # randperm(B)

    block_full = (1, C, TARGET_HW, TARGET_HW)
    grid_spec = pltpu.PrefetchScalarGridSpec(
        num_scalar_prefetch=2,            # (index, params) land in SMEM
        grid=(B,),
        in_specs=[
            # raw small augment image for batch i (native dtype, upcast in-kernel)
            pl.BlockSpec((1, C, h_in, w_in), lambda i, idx, prm: (i, 0, 0, 0)),
            # resize weight matrices: constant block index -> stay resident, no re-DMA
            pl.BlockSpec((TARGET_HW, h_in), lambda i, idx, prm: (0, 0)),
            pl.BlockSpec((w_in, TARGET_HW), lambda i, idx, prm: (0, 0)),
            # permuted original image images[index[i]] (native dtype, upcast in-kernel)
            pl.BlockSpec(block_full, lambda i, idx, prm: (idx[i], 0, 0, 0)),
        ],
        out_specs=pl.BlockSpec(block_full, lambda i, idx, prm: (i, 0, 0, 0)),
    )

    mixed = pl.pallas_call(
        _mixup_kernel,
        # Emit directly in the target dtype: no post-kernel cast pass.
        out_shape=jax.ShapeDtypeStruct((B, C, TARGET_HW, TARGET_HW), target_dtype),
        grid_spec=grid_spec,
        # Batch elements are independent -> shard across TensorCores on v7x.
        compiler_params=pltpu.CompilerParams(dimension_semantics=("parallel",)),
    )(index, params, augment_images, r_h, r_wt, images)

    return mixed


if __name__ == "__main__":
    key = jax.random.PRNGKey(0)
    k_img, k_aug, k_fwd = jax.random.split(key, 3)

    B, C = 2, 3
    # images are expected at the post-resize resolution (mixed 1:1 with the resized
    # augment_images in the reference); augment_images at a small raw size.
    images = jax.random.normal(k_img, (B, C, TARGET_HW, TARGET_HW), dtype=jnp.float32)
    augment_images = jax.random.uniform(k_aug, (B, C, 16, 16), dtype=jnp.float32)

    out = mixup_forward(images, augment_images, k_fwd)
    jax.block_until_ready(out)
    assert out.shape == (B, C, TARGET_HW, TARGET_HW)
    assert out.dtype == augment_images.dtype
    print("KERNEL_OK")
</pallas_src>

<mosaic_0001>
module attributes {stable_mosaic.version = 11 : i64} {
  func.func @_mixup_kernel(%arg0: i32, %arg1: memref<2xi32, #tpu.memory_space<smem>>, %arg2: memref<7xf32, #tpu.memory_space<smem>>, %arg3: memref<1x3x16x16xf32, #tpu.memory_space<vmem>>, %arg4: memref<224x16xf32, #tpu.memory_space<vmem>>, %arg5: memref<16x224xf32, #tpu.memory_space<vmem>>, %arg6: memref<1x3x224x224xf32, #tpu.memory_space<vmem>>, %arg7: memref<1x3x224x224xf32, #tpu.memory_space<vmem>>) attributes {dimension_semantics = [#tpu.dimension_semantics<parallel>], iteration_bounds = array<i64: 2>, scalar_prefetch = 2 : i64, scratch_operands = 0 : i64, tpu.core_type = #tpu.core_type<tc>, window_params = [{transform_indices = @transform_0, window_bounds = array<i64: 1, 3, 16, 16>}, {pipeline_mode = #tpu.pipeline_mode<synchronous>, transform_indices = @transform_1, window_bounds = array<i64: 224, 16>}, {pipeline_mode = #tpu.pipeline_mode<synchronous>, transform_indices = @transform_2, window_bounds = array<i64: 16, 224>}, {transform_indices = @transform_3, window_bounds = array<i64: 1, 3, 224, 224>}, {transform_indices = @transform_4, window_bounds = array<i64: 1, 3, 224, 224>}]} {
    %c6 = arith.constant 6 : index
    %0 = memref.load %arg2[%c6] : memref<7xf32, #tpu.memory_space<smem>>
    %c0 = arith.constant 0 : index
    %c0_0 = arith.constant 0 : index
    %1 = vector.load %arg4[%c0, %c0_0] : memref<224x16xf32, #tpu.memory_space<vmem>>, vector<224x16xf32>
    %c0_1 = arith.constant 0 : index
    %c0_2 = arith.constant 0 : index
    %2 = vector.load %arg5[%c0_1, %c0_2] : memref<16x224xf32, #tpu.memory_space<vmem>>, vector<16x224xf32>
    %c0_3 = arith.constant 0 : index
    %3 = memref.load %arg2[%c0_3] : memref<7xf32, #tpu.memory_space<smem>>
    %c3 = arith.constant 3 : index
    %4 = memref.load %arg2[%c3] : memref<7xf32, #tpu.memory_space<smem>>
    %c0_4 = arith.constant 0 : index
    %c0_5 = arith.constant 0 : index
    %c0_6 = arith.constant 0 : index
    %c0_7 = arith.constant 0 : index
    %5 = vector.load %arg3[%c0_4, %c0_5, %c0_6, %c0_7] : memref<1x3x16x16xf32, #tpu.memory_space<vmem>>, vector<1x1x16x16xf32>
    %6 = vector.shape_cast %5 : vector<1x1x16x16xf32> to vector<16x16xf32>
    %cst = arith.constant dense<0.000000e+00> : vector<16x224xf32>
    %7 = tpu.matmul %6, %2, %cst {dimension_numbers = #tpu.dot_dimension_numbers<[1], [0], [0], [1], [0, 0, 1, 1], [], []>} : vector<16x16xf32>, vector<16x224xf32>, vector<16x224xf32> -> vector<16x224xf32>
    %cst_8 = arith.constant dense<0.000000e+00> : vector<224x224xf32>
    %8 = tpu.matmul %1, %7, %cst_8 {dimension_numbers = #tpu.dot_dimension_numbers<[1], [0], [0], [1], [0, 0, 1, 1], [], []>} : vector<224x16xf32>, vector<16x224xf32>, vector<224x224xf32> -> vector<224x224xf32>
    %c0_9 = arith.constant 0 : index
    %c0_10 = arith.constant 0 : index
    %c0_11 = arith.constant 0 : index
    %c0_12 = arith.constant 0 : index
    %9 = vector.load %arg6[%c0_9, %c0_10, %c0_11, %c0_12] : memref<1x3x224x224xf32, #tpu.memory_space<vmem>>, vector<1x1x224x224xf32>
    %10 = vector.shape_cast %9 : vector<1x1x224x224xf32> to vector<224x224xf32>
    %11 = vector.broadcast %3 : f32 to vector<224x224xf32>
    %12 = arith.mulf %11, %8 : vector<224x224xf32>
    %13 = vector.broadcast %0 : f32 to vector<224x224xf32>
    %14 = arith.mulf %13, %10 : vector<224x224xf32>
    %15 = arith.addf %12, %14 : vector<224x224xf32>
    %16 = vector.broadcast %4 : f32 to vector<224x224xf32>
    %17 = arith.addf %15, %16 : vector<224x224xf32>
    %c0_13 = arith.constant 0 : index
    %c0_14 = arith.constant 0 : index
    %c0_15 = arith.constant 0 : index
    %c0_16 = arith.constant 0 : index
    %18 = vector.load %arg7[%c0_13, %c0_14, %c0_15, %c0_16] : memref<1x3x224x224xf32, #tpu.memory_space<vmem>>, vector<1x1x224x224xf32>
    %19 = vector.shape_cast %18 : vector<1x1x224x224xf32> to vector<224x224xf32>
    %20 = vector.shape_cast %17 : vector<224x224xf32> to vector<1x1x224x224xf32>
    tpu.vector_store %arg7[%c0_13, %c0_14, %c0_15, %c0_16], %20 {strides = array<i32>} : memref<1x3x224x224xf32, #tpu.memory_space<vmem>>, vector<1x1x224x224xf32>,
    %c1 = arith.constant 1 : index
    %21 = memref.load %arg2[%c1] : memref<7xf32, #tpu.memory_space<smem>>
    %c4 = arith.constant 4 : index
    %22 = memref.load %arg2[%c4] : memref<7xf32, #tpu.memory_space<smem>>
    %c0_17 = arith.constant 0 : index
    %c1_18 = arith.constant 1 : index
    %c0_19 = arith.constant 0 : index
    %c0_20 = arith.constant 0 : index
    %23 = vector.load %arg3[%c0_17, %c1_18, %c0_19, %c0_20] : memref<1x3x16x16xf32, #tpu.memory_space<vmem>>, vector<1x1x16x16xf32>
    %24 = vector.shape_cast %23 : vector<1x1x16x16xf32> to vector<16x16xf32>
    %cst_21 = arith.constant dense<0.000000e+00> : vector<16x224xf32>
    %25 = tpu.matmul %24, %2, %cst_21 {dimension_numbers = #tpu.dot_dimension_numbers<[1], [0], [0], [1], [0, 0, 1, 1], [], []>} : vector<16x16xf32>, vector<16x224xf32>, vector<16x224xf32> -> vector<16x224xf32>
    %cst_22 = arith.constant dense<0.000000e+00> : vector<224x224xf32>
    %26 = tpu.matmul %1, %25, %cst_22 {dimension_numbers = #tpu.dot_dimension_numbers<[1], [0], [0], [1], [0, 0, 1, 1], [], []>} : vector<224x16xf32>, vector<16x224xf32>, vector<224x224xf32> -> vector<224x224xf32>
    %c0_23 = arith.constant 0 : index
    %c1_24 = arith.constant 1 : index
    %c0_25 = arith.constant 0 : index
    %c0_26 = arith.constant 0 : index
    %27 = vector.load %arg6[%c0_23, %c1_24, %c0_25, %c0_26] : memref<1x3x224x224xf32, #tpu.memory_space<vmem>>, vector<1x1x224x224xf32>
    %28 = vector.shape_cast %27 : vector<1x1x224x224xf32> to vector<224x224xf32>
    %29 = vector.broadcast %21 : f32 to vector<224x224xf32>
    %30 = arith.mulf %29, %26 : vector<224x224xf32>
    %31 = vector.broadcast %0 : f32 to vector<224x224xf32>
    %32 = arith.mulf %31, %28 : vector<224x224xf32>
    %33 = arith.addf %30, %32 : vector<224x224xf32>
    %34 = vector.broadcast %22 : f32 to vector<224x224xf32>
    %35 = arith.addf %33, %34 : vector<224x224xf32>
    %c0_27 = arith.constant 0 : index
    %c1_28 = arith.constant 1 : index
    %c0_29 = arith.constant 0 : index
    %c0_30 = arith.constant 0 : index
    %36 = vector.load %arg7[%c0_27, %c1_28, %c0_29, %c0_30] : memref<1x3x224x224xf32, #tpu.memory_space<vmem>>, vector<1x1x224x224xf32>
    %37 = vector.shape_cast %36 : vector<1x1x224x224xf32> to vector<224x224xf32>
    %38 = vector.shape_cast %35 : vector<224x224xf32> to vector<1x1x224x224xf32>
    tpu.vector_store %arg7[%c0_27, %c1_28, %c0_29, %c0_30], %38 {strides = array<i32>} : memref<1x3x224x224xf32, #tpu.memory_space<vmem>>, vector<1x1x224x224xf32>,
    %c2 = arith.constant 2 : index
    %39 = memref.load %arg2[%c2] : memref<7xf32, #tpu.memory_space<smem>>
    %c5 = arith.constant 5 : index
    %40 = memref.load %arg2[%c5] : memref<7xf32, #tpu.memory_space<smem>>
    %c0_31 = arith.constant 0 : index
    %c2_32 = arith.constant 2 : index
    %c0_33 = arith.constant 0 : index
    %c0_34 = arith.constant 0 : index
    %41 = vector.load %arg3[%c0_31, %c2_32, %c0_33, %c0_34] : memref<1x3x16x16xf32, #tpu.memory_space<vmem>>, vector<1x1x16x16xf32>
    %42 = vector.shape_cast %41 : vector<1x1x16x16xf32> to vector<16x16xf32>
    %cst_35 = arith.constant dense<0.000000e+00> : vector<16x224xf32>
    %43 = tpu.matmul %42, %2, %cst_35 {dimension_numbers = #tpu.dot_dimension_numbers<[1], [0], [0], [1], [0, 0, 1, 1], [], []>} : vector<16x16xf32>, vector<16x224xf32>, vector<16x224xf32> -> vector<16x224xf32>
    %cst_36 = arith.constant dense<0.000000e+00> : vector<224x224xf32>
    %44 = tpu.matmul %1, %43, %cst_36 {dimension_numbers = #tpu.dot_dimension_numbers<[1], [0], [0], [1], [0, 0, 1, 1], [], []>} : vector<224x16xf32>, vector<16x224xf32>, vector<224x224xf32> -> vector<224x224xf32>
    %c0_37 = arith.constant 0 : index
    %c2_38 = arith.constant 2 : index
    %c0_39 = arith.constant 0 : index
    %c0_40 = arith.constant 0 : index
    %45 = vector.load %arg6[%c0_37, %c2_38, %c0_39, %c0_40] : memref<1x3x224x224xf32, #tpu.memory_space<vmem>>, vector<1x1x224x224xf32>
    %46 = vector.shape_cast %45 : vector<1x1x224x224xf32> to vector<224x224xf32>
    %47 = vector.broadcast %39 : f32 to vector<224x224xf32>
    %48 = arith.mulf %47, %44 : vector<224x224xf32>
    %49 = vector.broadcast %0 : f32 to vector<224x224xf32>
    %50 = arith.mulf %49, %46 : vector<224x224xf32>
    %51 = arith.addf %48, %50 : vector<224x224xf32>
    %52 = vector.broadcast %40 : f32 to vector<224x224xf32>
    %53 = arith.addf %51, %52 : vector<224x224xf32>
    %c0_41 = arith.constant 0 : index
    %c2_42 = arith.constant 2 : index
    %c0_43 = arith.constant 0 : index
    %c0_44 = arith.constant 0 : index
    %54 = vector.load %arg7[%c0_41, %c2_42, %c0_43, %c0_44] : memref<1x3x224x224xf32, #tpu.memory_space<vmem>>, vector<1x1x224x224xf32>
    %55 = vector.shape_cast %54 : vector<1x1x224x224xf32> to vector<224x224xf32>
    %56 = vector.shape_cast %53 : vector<224x224xf32> to vector<1x1x224x224xf32>
    tpu.vector_store %arg7[%c0_41, %c2_42, %c0_43, %c0_44], %56 {strides = array<i32>} : memref<1x3x224x224xf32, #tpu.memory_space<vmem>>, vector<1x1x224x224xf32>,
    return
  }
  func.func @transform_0(%arg0: i32, %arg1: memref<2xi32, #tpu.memory_space<smem>>, %arg2: memref<7xf32, #tpu.memory_space<smem>>) -> (i32, i32, i32, i32) {
    %c0_i32 = arith.constant 0 : i32
    %c0_i32_0 = arith.constant 0 : i32
    %c0_i32_1 = arith.constant 0 : i32
    %c0_i32_2 = arith.constant 0 : i32
    return %arg0, %c0_i32, %c0_i32_0, %c0_i32_1 : i32, i32, i32, i32
  }
  func.func @transform_1(%arg0: i32, %arg1: memref<2xi32, #tpu.memory_space<smem>>, %arg2: memref<7xf32, #tpu.memory_space<smem>>) -> (i32, i32) {
    %c0_i32 = arith.constant 0 : i32
    %c0_i32_0 = arith.constant 0 : i32
    %c0_i32_1 = arith.constant 0 : i32
    return %c0_i32, %c0_i32_0 : i32, i32
  }
  func.func @transform_2(%arg0: i32, %arg1: memref<2xi32, #tpu.memory_space<smem>>, %arg2: memref<7xf32, #tpu.memory_space<smem>>) -> (i32, i32) {
    %c0_i32 = arith.constant 0 : i32
    %c0_i32_0 = arith.constant 0 : i32
    %c0_i32_1 = arith.constant 0 : i32
    return %c0_i32, %c0_i32_0 : i32, i32
  }
  func.func @transform_3(%arg0: i32, %arg1: memref<2xi32, #tpu.memory_space<smem>>, %arg2: memref<7xf32, #tpu.memory_space<smem>>) -> (i32, i32, i32, i32) {
    %0 = arith.index_cast %arg0 : i32 to index
    %1 = memref.load %arg1[%0] : memref<2xi32, #tpu.memory_space<smem>>
    %c0_i32 = arith.constant 0 : i32
    %c0_i32_0 = arith.constant 0 : i32
    %c0_i32_1 = arith.constant 0 : i32
    %c0_i32_2 = arith.constant 0 : i32
    return %1, %c0_i32, %c0_i32_0, %c0_i32_1 : i32, i32, i32, i32
  }
  func.func @transform_4(%arg0: i32, %arg1: memref<2xi32, #tpu.memory_space<smem>>, %arg2: memref<7xf32, #tpu.memory_space<smem>>) -> (i32, i32, i32, i32) {
    %c0_i32 = arith.constant 0 : i32
    %c0_i32_0 = arith.constant 0 : i32
    %c0_i32_1 = arith.constant 0 : i32
    %c0_i32_2 = arith.constant 0 : i32
    return %arg0, %c0_i32, %c0_i32_0, %c0_i32_1 : i32, i32, i32, i32
  }
}

</mosaic_0001>

<llo_original>
// kernel: tpu_custom_call.1
$region0: #{tpu_custom_call.1}
  #allocation0 [shape = 'u32[]', space=smem, size = 0x4, offset = 0x4, fixed_abs, tag = 'smem constant byte address 0x4 - core index']
  #allocation1 [shape = 'u32[144,128]{1,0:T(1,128)}', space=vmem, size = 0x12000, scoped, tag = 'internal scratch']
  #allocation2 [shape = 's32[1]{0}', space=sflag, size = 0x4, scoped, tag = 'scoped memory for tpu_custom_call.1']
  #allocation3 [shape = 'u8[512]{0}', space=smem, size = 0x200, scoped, tag = 'prefetched SMEM operand 0']
  #allocation4 [shape = 'u8[512]{0}', space=smem, size = 0x200, scoped, tag = 'prefetched SMEM operand 1']
  %s0 = inlined_call_operand.hbm [shape: s32[2], index: 0, kind: input, shape index: {}]
  %s1 = inlined_call_operand.hbm [shape: f32[7], index: 1, kind: input, shape index: {}]
  %s2 = inlined_call_operand.hbm [shape: f32[2,3,16,16], index: 2, kind: input, shape index: {}]
  %s3 = inlined_call_operand.vmem [shape: f32[224,16], index: 3, kind: input, shape index: {}]
  %s4 = inlined_call_operand.hbm [shape: f32[16,224], index: 4, kind: input, shape index: {}]
  %s5 = inlined_call_operand.hbm [shape: f32[2,3,224,224], index: 5, kind: input, shape index: {}]
  %s6 = inlined_call_operand.hbm [shape: f32[2,3,224,224], index: 6, kind: output, shape index: {}]
  %s7 = sld [smem:[#allocation0]]
  $region61: #{tpu_custom_call.1} parent=0
    _
  %s9 = ssub.s32 1, %s7
  %s10 = scalar_select 0, %s9, %s7
  %12 = dma.hbm_to_smem %s0, 16, [#allocation3], [#allocation2]
  %14 = dma.hbm_to_smem %s1, 16, [#allocation4], [#allocation2]
  %15 = dma.done [#allocation2], 32
  %16 = sfence
  $region1: #{tpu_custom_call.1} parent=0
    #allocation5 [shape = 'u8[49152]{0}', space=vmem, size = 0xc000, scoped, tag = 'input window, operand 2']
    #allocation6 [shape = 's32[2]{0}', space=sflag, size = 0x8, scoped, tag = 'scoped memory for tpu_custom_call.1']
    #allocation7 [shape = 's32[2]{0}', space=sflag, size = 0x8, scoped, tag = 'scoped memory for tpu_custom_call.1']
    #allocation8 [shape = 'u8[16384]{0}', space=vmem, size = 0x4000, scoped, tag = 'input window, operand 4, single buffered']
    #allocation9 [shape = 's32[1]{0}', space=sflag, size = 0x4, scoped, tag = 'scoped memory for tpu_custom_call.1']
    #allocation10 [shape = 'u8[1376256]{0}', space=vmem, size = 0x150000, scoped, tag = 'input window, operand 5']
    #allocation11 [shape = 'u8[1376256]{0}', space=vmem, size = 0x150000, scoped, tag = 'output window, operand 0']
    %17 = vsyncpa [#allocation6], 0
    %s18 = scalar_lea.sflag [#allocation6], 1
    %19 = vsyncpa %s18, 0
    %20 = vsyncpa [#allocation9], 0
    %21 = vsyncpa [#allocation7], 0
    %s22 = scalar_lea.sflag [#allocation7], 1
    %23 = vsyncpa %s22, 0
    loop: start=0, step=1, limit=4
    $region2: #{tpu_custom_call.1} parent=1 // loop_pre_header
      _
    $region3: #{tpu_custom_call.1} parent=1 // loop_header
      %s25 = sphi 0, %s29
      %p26 = scmp.ge.s32.totalorder %s25, 4
      %s35 = sphi 0, %s37
      %s38 = sphi 0, %s35
      %s39 = sphi 0, %s38
      %s55 = sphi 0, %s39
      %s59 = sphi 0, %s59
      %s61 = sphi 0, %s59
      %s62 = sphi 0, %s61
      %s76 = sphi 0, %s62
      %s80 = sphi 0, %s80
      %s82 = sphi 0, %s80
      %s83 = sphi 0, %s82
      %s97 = sphi 0, %s83
      %s105 = sphi 0, %s107
      %s108 = sphi 0, %s105
      %s109 = sphi 0, %s108
      %s125 = sphi 0, %s109
      %s131 = sphi 0, %s133
      %s134 = sphi 0, %s131
      %s135 = sphi 0, %s134
      %s151 = sphi 0, %s135
    $region4: #{tpu_custom_call.1} parent=1 // loop_header_branch
      %28 = sbr.rel (%p26) target = $region8
    $region5: #{tpu_custom_call.1} parent=1 // loop_body
      %s30 = ssub.s32 %s25, 1
      %s31 = ssub.s32 %s25, 2
      %s32 = sadd.s32 %s25, 1
      %s33 = ssub.s32 %s25, %s32
      %p34 = scmp.eq.s32.totalorder %s33, 0
      %s36 = sadd.s32 %s35, 1
      %s37 = scalar_select %p34, %s35, %s36
      %p40 = pneg %p34
      %p41 = scmp.eq.s32.totalorder %s25, 1
      %p42 = por %p40, %p41
      %p43 = scmp.ne.s32.totalorder %s35, %s38
      %p44 = scmp.eq.s32.totalorder %s25, 0
      %p45 = por %p43, %p44
      %p46 = scmp.ne.s32.totalorder %s35, %s38
      %p47 = scmp.eq.s32.totalorder %s30, 1
      %p48 = por %p46, %p47
      %p49 = scmp.ne.s32.totalorder %s38, %s39
      %p50 = scmp.eq.s32.totalorder %s30, 0
      %p51 = por %p49, %p50
      %p52 = scmp.ne.s32.totalorder %s38, %s39
      %p53 = scmp.eq.s32.totalorder %s31, 1
      %p54 = por %p52, %p53
      %p56 = scmp.ne.s32.totalorder %s39, %s55
      %p57 = scmp.eq.s32.totalorder %s31, 0
      %p58 = por %p56, %p57
      %s60 = sadd.s32 %s59, 1
      %p63 = scmp.eq.s32.totalorder %s25, 1
      %p64 = scmp.ne.s32.totalorder %s59, %s61
      %p65 = scmp.eq.s32.totalorder %s25, 0
      %p66 = por %p64, %p65
      %p67 = scmp.ne.s32.totalorder %s59, %s61
      %p68 = scmp.eq.s32.totalorder %s30, 1
      %p69 = por %p67, %p68
      %p70 = scmp.ne.s32.totalorder %s61, %s62
      %p71 = scmp.eq.s32.totalorder %s30, 0
      %p72 = por %p70, %p71
      %p73 = scmp.ne.s32.totalorder %s61, %s62
      %p74 = scmp.eq.s32.totalorder %s31, 1
      %p75 = por %p73, %p74
      %p77 = scmp.ne.s32.totalorder %s62, %s76
      %p78 = scmp.eq.s32.totalorder %s31, 0
      %p79 = por %p77, %p78
      %s81 = sadd.s32 %s80, 1
      %p84 = scmp.eq.s32.totalorder %s25, 1
      %p85 = scmp.ne.s32.totalorder %s80, %s82
      %p86 = scmp.eq.s32.totalorder %s25, 0
      %p87 = por %p85, %p86
      %p88 = scmp.ne.s32.totalorder %s80, %s82
      %p89 = scmp.eq.s32.totalorder %s30, 1
      %p90 = por %p88, %p89
      %p91 = scmp.ne.s32.totalorder %s82, %s83
      %p92 = scmp.eq.s32.totalorder %s30, 0
      %p93 = por %p91, %p92
      %p94 = scmp.ne.s32.totalorder %s82, %s83
      %p95 = scmp.eq.s32.totalorder %s31, 1
      %p96 = por %p94, %p95
      %p98 = scmp.ne.s32.totalorder %s83, %s97
      %p99 = scmp.eq.s32.totalorder %s31, 0
      %p100 = por %p98, %p99
      %s101 = sld [smem:[#allocation3 + %s25]]
      %s102 = sld [smem:[#allocation3 + %s32]]
      %s103 = ssub.s32 %s101, %s102
      %p104 = scmp.eq.s32.totalorder %s103, 0
      %s106 = sadd.s32 %s105, 1
      %s107 = scalar_select %p104, %s105, %s106
      %p110 = pneg %p104
      %p111 = scmp.eq.s32.totalorder %s25, 1
      %p112 = por %p110, %p111
      %p113 = scmp.ne.s32.totalorder %s105, %s108
      %p114 = scmp.eq.s32.totalorder %s25, 0
      %p115 = por %p113, %p114
      %p116 = scmp.ne.s32.totalorder %s105, %s108
      %p117 = scmp.eq.s32.totalorder %s30, 1
      %p118 = por %p116, %p117
      %p119 = scmp.ne.s32.totalorder %s108, %s109
      %p120 = scmp.eq.s32.totalorder %s30, 0
      %p121 = por %p119, %p120
      %p122 = scmp.ne.s32.totalorder %s108, %s109
      %p123 = scmp.eq.s32.totalorder %s31, 1
      %p124 = por %p122, %p123
      %p126 = scmp.ne.s32.totalorder %s109, %s125
      %p127 = scmp.eq.s32.totalorder %s31, 0
      %p128 = por %p126, %p127
      %s129 = ssub.s32 %s25, %s32
      %p130 = scmp.eq.s32.totalorder %s129, 0
      %s132 = sadd.s32 %s131, 1
      %s133 = scalar_select %p130, %s131, %s132
      %p136 = pneg %p130
      %p137 = scmp.eq.s32.totalorder %s25, 1
      %p138 = por %p136, %p137
      %p139 = scmp.ne.s32.totalorder %s131, %s134
      %p140 = scmp.eq.s32.totalorder %s25, 0
      %p141 = por %p139, %p140
      %p142 = scmp.ne.s32.totalorder %s131, %s134
      %p143 = scmp.eq.s32.totalorder %s30, 1
      %p144 = por %p142, %p143
      %p145 = scmp.ne.s32.totalorder %s134, %s135
      %p146 = scmp.eq.s32.totalorder %s30, 0
      %p147 = por %p145, %p146
      %p148 = scmp.ne.s32.totalorder %s134, %s135
      %p149 = scmp.eq.s32.totalorder %s31, 1
      %p150 = por %p148, %p149
      %p152 = scmp.ne.s32.totalorder %s135, %s151
      %p153 = scmp.eq.s32.totalorder %s31, 0
      %p154 = por %p152, %p153
      %p155 = scmp.le.s32.totalorder 1, %s25
      %p156 = scmp.lt.s32.totalorder %s25, 3
      %p157 = pnand %p155, %p156
      %p158 = pneg %p157
      // Predicated region
      $region9: #{tpu_custom_call.1} parent=5 // pred_check
        _
      $region10: #{tpu_custom_call.1} parent=5 // pred_check_branch
        %160 = sbr.rel (%p157) target = $region12
      $region11: #{tpu_custom_call.1} parent=5 // pred_region
        %s161 = ssub.s32 %s25, 1
        // Predicated region
        $region13: #{tpu_custom_call.1} parent=11 // pred_check
          %p162 = pneg %p72
        $region14: #{tpu_custom_call.1} parent=11 // pred_check_branch
          %164 = sbr.rel (%p162) target = $region16
        $region15: #{tpu_custom_call.1} parent=11 // pred_region
          _
        $region16: #{tpu_custom_call.1} parent=11 // pred_fallthru
          _
        // Predicated region
        $region17: #{tpu_custom_call.1} parent=11 // pred_check
          %p165 = pneg %p93
        $region18: #{tpu_custom_call.1} parent=11 // pred_check_branch
          %167 = sbr.rel (%p165) target = $region20
        $region19: #{tpu_custom_call.1} parent=11 // pred_region
          %s169 = ssub.s32 512, 512
          %170 = vsyncadd [#allocation9], %s169
          %s171 = sshll.u32 [#allocation8], 4
          %s172 = int_to_ptr.vmem [resolvable:$true] %s171
          %177 = dma.hbm_to_vmem [thread:$0]  %s4, 512, %s172, [#allocation9], 256, 256, 16
        $region20: #{tpu_custom_call.1} parent=11 // pred_fallthru
          _
      $region12: #{tpu_custom_call.1} parent=5 // pred_fallthru
        _
      %p178 = scmp.lt.s32.totalorder %s25, 2
      // Predicated region
      $region21: #{tpu_custom_call.1} parent=5 // pred_check
        %p179 = pneg %p178
      $region22: #{tpu_custom_call.1} parent=5 // pred_check_branch
        %181 = sbr.rel (%p179) target = $region24
      $region23: #{tpu_custom_call.1} parent=5 // pred_region
        // Predicated region
        $region25: #{tpu_custom_call.1} parent=23 // pred_check
          %p182 = pneg %p45
        $region26: #{tpu_custom_call.1} parent=23 // pred_check_branch
          %184 = sbr.rel (%p182) target = $region28
        $region27: #{tpu_custom_call.1} parent=23 // pred_region
          %s185 = sand.u32 %s25, 1
          %s186 = scalar_lea.sflag [#allocation6], %s185
          %s187 = sand.u32 %s35, 1
          %s188 = smul.addr %s187, 48
          %s189 = scalar_lea.vmem [#allocation5], %s188
          %s191 = ssub.s32 768, 768
          %192 = vsyncadd %s186, %s191
          %s193 = smul.addr %s25, 6
          %s194 = smul.addr %s193, 128
          %s195 = scalar_lea.hbm %s2, %s194
          %s196 = sshll.u32 %s189, 4
          %s197 = int_to_ptr.vmem [resolvable:$true] %s196
          %202 = dma.hbm_to_vmem [thread:$0]  %s195, 768, %s197, %s186, 128, 128, 8
        $region28: #{tpu_custom_call.1} parent=23 // pred_fallthru
          _
        // Predicated region
        $region29: #{tpu_custom_call.1} parent=23 // pred_check
          %p203 = pneg %p115
        $region30: #{tpu_custom_call.1} parent=23 // pred_check_branch
          %205 = sbr.rel (%p203) target = $region32
        $region31: #{tpu_custom_call.1} parent=23 // pred_region
          %s206 = sand.u32 %s25, 1
          %s207 = scalar_lea.sflag [#allocation6], %s206
          %s208 = sand.u32 %s105, 1
          %s209 = smul.addr %s208, 1344
          %s210 = scalar_lea.vmem [#allocation10], %s209
          %s211 = sld [smem:[#allocation3 + %s25]]
          %s213 = ssub.s32 21504, 21504
          %214 = vsyncadd %s207, %s213
          %s215 = smul.addr %s211, 168
          %s216 = smul.addr %s215, 128
          %s217 = scalar_lea.hbm %s5, %s216
          %s218 = sshll.u32 %s210, 4
          %s219 = int_to_ptr.vmem [resolvable:$true] %s218
          %224 = dma.hbm_to_vmem [thread:$0]  %s217, 21504, %s219, %s207, 256, 256, 16
        $region32: #{tpu_custom_call.1} parent=23 // pred_fallthru
          _
      $region24: #{tpu_custom_call.1} parent=5 // pred_fallthru
        _
      %p225 = scmp.le.s32.totalorder 1, %s25
      %p226 = scmp.lt.s32.totalorder %s25, 3
      %p227 = pnand %p225, %p226
      %p228 = pneg %p227
      // Predicated region
      $region33: #{tpu_custom_call.1} parent=5 // pred_check
        _
      $region34: #{tpu_custom_call.1} parent=5 // pred_check_branch
        %230 = sbr.rel (%p227) target = $region36
      $region35: #{tpu_custom_call.1} parent=5 // pred_region
        %s231 = ssub.s32 %s25, 1
        %s232 = sand.u32 %s30, 1
        %s233 = scalar_lea.sflag [#allocation6], %s232
        %s234 = sand.u32 %s38, 1
        %s235 = smul.addr %s234, 48
        %s236 = scalar_lea.vmem [#allocation5], %s235
        // Predicated region
        $region37: #{tpu_custom_call.1} parent=35 // pred_check
          %p237 = pneg %p51
        $region38: #{tpu_custom_call.1} parent=35 // pred_check_branch
          %239 = sbr.rel (%p237) target = $region40
        $region39: #{tpu_custom_call.1} parent=35 // pred_region
          %240 = dma.done %s233, 768
        $region40: #{tpu_custom_call.1} parent=35 // pred_fallthru
          _
        // Predicated region
        $region41: #{tpu_custom_call.1} parent=35 // pred_check
          %p241 = pneg %p93
        $region42: #{tpu_custom_call.1} parent=35 // pred_check_branch
          %243 = sbr.rel (%p241) target = $region44
        $region43: #{tpu_custom_call.1} parent=35 // pred_region
          %244 = dma.done [#allocation9], 512
        $region44: #{tpu_custom_call.1} parent=35 // pred_fallthru
          _
        %s245 = sand.u32 %s30, 1
        %s246 = scalar_lea.sflag [#allocation6], %s245
        %s247 = sand.u32 %s108, 1
        %s248 = smul.addr %s247, 1344
        %s249 = scalar_lea.vmem [#allocation10], %s248
        // Predicated region
        $region45: #{tpu_custom_call.1} parent=35 // pred_check
          %p250 = pneg %p121
        $region46: #{tpu_custom_call.1} parent=35 // pred_check_branch
          %252 = sbr.rel (%p250) target = $region48
        $region47: #{tpu_custom_call.1} parent=35 // pred_region
          %253 = dma.done %s246, 21504
        $region48: #{tpu_custom_call.1} parent=35 // pred_fallthru
          _
        %s254 = sand.u32 %s30, 1
        %s255 = scalar_lea.sflag [#allocation6], %s254
        %s256 = sand.u32 %s38, 1
        %s257 = smul.addr %s256, 48
        %s258 = scalar_lea.vmem [#allocation5], %s257
        %p259 = pneg %p51
        %p260 = pneg %p48
        %p261 = pneg %p72
        %p262 = pneg %p69
        %p263 = pneg %p93
        %p264 = pneg %p90
        %s265 = sand.u32 %s30, 1
        %s266 = scalar_lea.sflag [#allocation6], %s265
        %s267 = sand.u32 %s108, 1
        %s268 = smul.addr %s267, 1344
        %s269 = scalar_lea.vmem [#allocation10], %s268
        %p270 = pneg %p121
        %p271 = pneg %p118
        %p272 = pneg %p147
        %p273 = pneg %p144
        %s274 = sand.u32 %s134, 1
        %s275 = scalar_lea.sflag [#allocation7], %s274
        %s276 = sand.u32 %s134, 1
        %s277 = smul.addr %s276, 1344
        %s278 = scalar_lea.vmem [#allocation11], %s277
        %s279 = sld [smem:[#allocation3 + %s30]]
        %s280 = sld [smem:[#allocation4 + $0x6]]
        %v281 = vld [vmem:[%s3] sm:$0xff]
        %v282 = vld [vmem:[%s3 + $0x8] sm:$0xff]
        %v283 = vld [vmem:[%s3 + $0x10] sm:$0xff]
        %v284 = vld [vmem:[%s3 + $0x18] sm:$0xff]
        %v285 = vld [vmem:[%s3 + $0x20] sm:$0xff]
        %v286 = vld [vmem:[%s3 + $0x28] sm:$0xff]
        %v287 = vld [vmem:[%s3 + $0x30] sm:$0xff]
        %v288 = vld [vmem:[%s3 + $0x38] sm:$0xff]
        %v289 = vld [vmem:[%s3 + $0x40] sm:$0xff]
        %v290 = vld [vmem:[%s3 + $0x48] sm:$0xff]
        %v291 = vld [vmem:[%s3 + $0x50] sm:$0xff]
        %v292 = vld [vmem:[%s3 + $0x58] sm:$0xff]
        %v293 = vld [vmem:[%s3 + $0x60] sm:$0xff]
        %v294 = vld [vmem:[%s3 + $0x68] sm:$0xff]
        %v295 = vld [vmem:[%s3 + $0x70] sm:$0xff]
        %v296 = vld [vmem:[%s3 + $0x78] sm:$0xff]
        %v297 = vld [vmem:[%s3 + $0x80] sm:$0xff]
        %v298 = vld [vmem:[%s3 + $0x88] sm:$0xff]
        %v299 = vld [vmem:[%s3 + $0x90] sm:$0xff]
        %v300 = vld [vmem:[%s3 + $0x98] sm:$0xff]
        %v301 = vld [vmem:[%s3 + $0xa0] sm:$0xff]
        %v302 = vld [vmem:[%s3 + $0xa8] sm:$0xff]
        %v303 = vld [vmem:[%s3 + $0xb0] sm:$0xff]
        %v304 = vld [vmem:[%s3 + $0xb8] sm:$0xff]
        %v305 = vld [vmem:[%s3 + $0xc0] sm:$0xff]
        %v306 = vld [vmem:[%s3 + $0xc8] sm:$0xff]
        %v307 = vld [vmem:[%s3 + $0xd0] sm:$0xff]
        %v308 = vld [vmem:[%s3 + $0xd8] sm:$0xff]
        %v309 = vld [vmem:[#allocation8] sm:$0xff]
        %v310 = vld [vmem:[#allocation8 + $0x8] sm:$0xff]
        %v311 = vld [vmem:[#allocation8 + $0x10] sm:$0xff]
        %v312 = vld [vmem:[#allocation8 + $0x18] sm:$0xff]
        %s313 = sld [smem:[#allocation4]]
        %s314 = sld [smem:[#allocation4 + $0x3]]
        %v315 = vld [vmem:[%s236] sm:$0xff]
        %v316 = vld [vmem:[%s236 + $0x8] sm:$0xff]
        %vm317 = vcmask 130048
        %v319 = vsel %vm317, %v315, 0
        %v322 = vsel %vm317, %v316, 0
        %324 = vmatprep.subr.mxu0 %v310
        %325 = vmatpush1.msra.mxu0 %v309
        %326 = vmatprep.subr.mxu0 %v312
        %327 = vmatpush1.msra.mxu0 %v311
        %328 = vmatprep.subr.mxu0 0.0
        %329 = vmatpush1.msra.mxu0 0.0
        %330 = vmatprep.subr.mxu0 0.0
        %331 = vmatpush1.msra.mxu0 0.0
        %332 = vmatprep.subr.mxu0 0.0
        %333 = vmatpush1.msra.mxu0 0.0
        %334 = vmatprep.subr.mxu0 0.0
        %335 = vmatpush1.msra.mxu0 0.0
        %336 = vmatprep.subr.mxu0 0.0
        %337 = vmatpush1.msra.mxu0 0.0
        %338 = vmatprep.subr.mxu0 0.0
        %339 = vmatpush1.msra.mxu0 0.0
        %340 = vmatprep.subr.mxu0 0.0
        %341 = vmatpush1.msra.mxu0 0.0
        %342 = vmatprep.subr.mxu0 0.0
        %343 = vmatpush1.msra.mxu0 0.0
        %344 = vmatprep.subr.mxu0 0.0
        %345 = vmatpush1.msra.mxu0 0.0
        %346 = vmatprep.subr.mxu0 0.0
        %347 = vmatpush1.msra.mxu0 0.0
        %348 = vmatprep.subr.mxu0 0.0
        %349 = vmatpush1.msra.mxu0 0.0
        %350 = vmatprep.subr.mxu0 0.0
        %351 = vmatpush1.msra.mxu0 0.0
        %352 = vmatprep.subr.mxu0 0.0
        %353 = vmatpush1.msra.mxu0 0.0
        %354 = vmatprep.subr.mxu0 0.0
        %355 = vmatpush1.msra.mxu0 0.0
        %356 = vmatprep.subr.mxu0 0.0
        %357 = vmatpush1.msra.mxu0 0.0
        %358 = vmatprep.subr.mxu0 0.0
        %359 = vmatpush1.msra.mxu0 0.0
        %360 = vmatprep.subr.mxu0 0.0
        %361 = vmatpush1.msra.mxu0 0.0
        %362 = vmatprep.subr.mxu0 0.0
        %363 = vmatpush1.msra.mxu0 0.0
        %364 = vmatprep.subr.mxu0 0.0
        %365 = vmatpush1.msra.mxu0 0.0
        %366 = vmatprep.subr.mxu0 0.0
        %367 = vmatpush1.msra.mxu0 0.0
        %368 = vmatprep.subr.mxu0 0.0
        %369 = vmatpush1.msra.mxu0 0.0
        %370 = vmatprep.subr.mxu0 0.0
        %371 = vmatpush1.msra.mxu0 0.0
        %372 = vmatprep.subr.mxu0 0.0
        %373 = vmatpush1.msra.mxu0 0.0
        %374 = vmatprep.subr.mxu0 0.0
        %375 = vmatpush1.msra.mxu0 0.0
        %376 = vmatprep.subr.mxu0 0.0
        %377 = vmatpush1.msra.mxu0 0.0
        %378 = vmatprep.subr.mxu0 0.0
        %379 = vmatpush1.msra.mxu0 0.0
        %380 = vmatprep.subr.mxu0 0.0
        %381 = vmatpush1.msra.mxu0 0.0
        %382 = vmatprep.subr.mxu0 0.0
        %383 = vmatpush1.msra.mxu0 0.0
        %384 = vmatprep.subr.mxu0 0.0
        %385 = vmatpush1.msra.mxu0 0.0
        %386 = vmatprep.subr.mxu0 0.0
        %387 = vmatpush1.msra.mxu0 0.0
        %388 = vmatprep.mubr.f32.mxu0 0.0
        %389 = vmatmul.mubr.f32.gmra.mrb[0].mxu0 %v319
        %v390 = vpop.f32.mrb[0].mxu0
        %v391 = vadd.f32 0.0, %v390
        %v392 = vpop.f32.mrb[0].mxu0
        %v393 = vadd.f32 0.0, %v392
        %394 = vmatprep.mubr.f32.mxu0 0.0
        %395 = vmatmul.mubr.f32.gmra.mrb[0].mxu0 %v322
        %v396 = vpop.f32.mrb[0].mxu0
        %v397 = vadd.f32 0.0, %v396
        %v398 = vpop.f32.mrb[0].mxu0
        %v399 = vadd.f32 0.0, %v398
        %400 = vdwg.mxu0
        %v402 = vsel %vm317, %v281, 0
        %v405 = vsel %vm317, %v282, 0
        %v408 = vsel %vm317, %v283, 0
        %v411 = vsel %vm317, %v284, 0
        %v414 = vsel %vm317, %v285, 0
        %v417 = vsel %vm317, %v286, 0
        %v420 = vsel %vm317, %v287, 0
        %v423 = vsel %vm317, %v288, 0
        %v426 = vsel %vm317, %v289, 0
        %v429 = vsel %vm317, %v290, 0
        %v432 = vsel %vm317, %v291, 0
        %v435 = vsel %vm317, %v292, 0
        %v438 = vsel %vm317, %v293, 0
        %v441 = vsel %vm317, %v294, 0
        %v444 = vsel %vm317, %v295, 0
        %v447 = vsel %vm317, %v296, 0
        %v450 = vsel %vm317, %v297, 0
        %v453 = vsel %vm317, %v298, 0
        %v456 = vsel %vm317, %v299, 0
        %v459 = vsel %vm317, %v300, 0
        %v462 = vsel %vm317, %v301, 0
        %v465 = vsel %vm317, %v302, 0
        %v468 = vsel %vm317, %v303, 0
        %v471 = vsel %vm317, %v304, 0
        %v474 = vsel %vm317, %v305, 0
        %v477 = vsel %vm317, %v306, 0
        %v480 = vsel %vm317, %v307, 0
        %v483 = vsel %vm317, %v308, 0
        %485 = vmatprep.subr.mxu0 %v393
        %486 = vmatpush1.msra.mxu0 %v391
        %487 = vmatprep.subr.mxu0 %v399
        %488 = vmatpush1.msra.mxu0 %v397
        %489 = vmatprep.subr.mxu0 0.0
        %490 = vmatpush1.msra.mxu0 0.0
        %491 = vmatprep.subr.mxu0 0.0
        %492 = vmatpush1.msra.mxu0 0.0
        %493 = vmatprep.subr.mxu0 0.0
        %494 = vmatpush1.msra.mxu0 0.0
        %495 = vmatprep.subr.mxu0 0.0
        %496 = vmatpush1.msra.mxu0 0.0
        %497 = vmatprep.subr.mxu0 0.0
        %498 = vmatpush1.msra.mxu0 0.0
        %499 = vmatprep.subr.mxu0 0.0
        %500 = vmatpush1.msra.mxu0 0.0
        %501 = vmatprep.subr.mxu0 0.0
        %502 = vmatpush1.msra.mxu0 0.0
        %503 = vmatprep.subr.mxu0 0.0
        %504 = vmatpush1.msra.mxu0 0.0
        %505 = vmatprep.subr.mxu0 0.0
        %506 = vmatpush1.msra.mxu0 0.0
        %507 = vmatprep.subr.mxu0 0.0
        %508 = vmatpush1.msra.mxu0 0.0
        %509 = vmatprep.subr.mxu0 0.0
        %510 = vmatpush1.msra.mxu0 0.0
        %511 = vmatprep.subr.mxu0 0.0
        %512 = vmatpush1.msra.mxu0 0.0
        %513 = vmatprep.subr.mxu0 0.0
        %514 = vmatpush1.msra.mxu0 0.0
        %515 = vmatprep.subr.mxu0 0.0
        %516 = vmatpush1.msra.mxu0 0.0
        %517 = vmatprep.subr.mxu0 0.0
        %518 = vmatpush1.msra.mxu0 0.0
        %519 = vmatprep.subr.mxu0 0.0
        %520 = vmatpush1.msra.mxu0 0.0
        %521 = vmatprep.subr.mxu0 0.0
        %522 = vmatpush1.msra.mxu0 0.0
        %523 = vmatprep.subr.mxu0 0.0
        %524 = vmatpush1.msra.mxu0 0.0
        %525 = vmatprep.subr.mxu0 0.0
        %526 = vmatpush1.msra.mxu0 0.0
        %527 = vmatprep.subr.mxu0 0.0
        %528 = vmatpush1.msra.mxu0 0.0
        %529 = vmatprep.subr.mxu0 0.0
        %530 = vmatpush1.msra.mxu0 0.0
        %531 = vmatprep.subr.mxu0 0.0
        %532 = vmatpush1.msra.mxu0 0.0
        %533 = vmatprep.subr.mxu0 0.0
        %534 = vmatpush1.msra.mxu0 0.0
        %535 = vmatprep.subr.mxu0 0.0
        %536 = vmatpush1.msra.mxu0 0.0
        %537 = vmatprep.subr.mxu0 0.0
        %538 = vmatpush1.msra.mxu0 0.0
        %539 = vmatprep.subr.mxu0 0.0
        %540 = vmatpush1.msra.mxu0 0.0
        %541 = vmatprep.subr.mxu0 0.0
        %542 = vmatpush1.msra.mxu0 0.0
        %543 = vmatprep.subr.mxu0 0.0
        %544 = vmatpush1.msra.mxu0 0.0
        %545 = vmatprep.subr.mxu0 0.0
        %546 = vmatpush1.msra.mxu0 0.0
        %547 = vmatprep.subr.mxu0 0.0
        %548 = vmatpush1.msra.mxu0 0.0
        %549 = vmatprep.mubr.f32.mxu0 0.0
        %550 = vmatmul.mubr.f32.gmra.mrb[0].mxu0 %v402
        %v551 = vpop.f32.mrb[0].mxu0
        %v552 = vadd.f32 0.0, %v551
        %v553 = vpop.f32.mrb[0].mxu0
        %v554 = vadd.f32 0.0, %v553
        %555 = vmatprep.mubr.f32.mxu0 0.0
        %556 = vmatmul.mubr.f32.gmra.mrb[0].mxu0 %v405
        %v557 = vpop.f32.mrb[0].mxu0
        %v558 = vadd.f32 0.0, %v557
        %v559 = vpop.f32.mrb[0].mxu0
        %v560 = vadd.f32 0.0, %v559
        %561 = vmatprep.mubr.f32.mxu0 0.0
        %562 = vmatmul.mubr.f32.gmra.mrb[0].mxu0 %v408
        %v563 = vpop.f32.mrb[0].mxu0
        %v564 = vadd.f32 0.0, %v563
        %v565 = vpop.f32.mrb[0].mxu0
        %v566 = vadd.f32 0.0, %v565
        %567 = vmatprep.mubr.f32.mxu0 0.0
        %568 = vmatmul.mubr.f32.gmra.mrb[0].mxu0 %v411
        %v569 = vpop.f32.mrb[0].mxu0
        %v570 = vadd.f32 0.0, %v569
        %v571 = vpop.f32.mrb[0].mxu0
        %v572 = vadd.f32 0.0, %v571
        %573 = vmatprep.mubr.f32.mxu0 0.0
        %574 = vmatmul.mubr.f32.gmra.mrb[0].mxu0 %v414
        %v575 = vpop.f32.mrb[0].mxu0
        %v576 = vadd.f32 0.0, %v575
        %v577 = vpop.f32.mrb[0].mxu0
        %v578 = vadd.f32 0.0, %v577
        %579 = vmatprep.mubr.f32.mxu0 0.0
        %580 = vmatmul.mubr.f32.gmra.mrb[0].mxu0 %v417
        %v581 = vpop.f32.mrb[0].mxu0
        %v582 = vadd.f32 0.0, %v581
        %v583 = vpop.f32.mrb[0].mxu0
        %v584 = vadd.f32 0.0, %v583
        %585 = vmatprep.mubr.f32.mxu0 0.0
        %586 = vmatmul.mubr.f32.gmra.mrb[0].mxu0 %v420
        %v587 = vpop.f32.mrb[0].mxu0
        %v588 = vadd.f32 0.0, %v587
        %v589 = vpop.f32.mrb[0].mxu0
        %v590 = vadd.f32 0.0, %v589
        %591 = vmatprep.mubr.f32.mxu0 0.0
        %592 = vmatmul.mubr.f32.gmra.mrb[0].mxu0 %v423
        %v593 = vpop.f32.mrb[0].mxu0
        %v594 = vadd.f32 0.0, %v593
        %v595 = vpop.f32.mrb[0].mxu0
        %v596 = vadd.f32 0.0, %v595
        %597 = vmatprep.mubr.f32.mxu0 0.0
        %598 = vmatmul.mubr.f32.gmra.mrb[0].mxu0 %v426
        %v599 = vpop.f32.mrb[0].mxu0
        %v600 = vadd.f32 0.0, %v599
        %v601 = vpop.f32.mrb[0].mxu0
        %v602 = vadd.f32 0.0, %v601
        %603 = vmatprep.mubr.f32.mxu0 0.0
        %604 = vmatmul.mubr.f32.gmra.mrb[0].mxu0 %v429
        %v605 = vpop.f32.mrb[0].mxu0
        %v606 = vadd.f32 0.0, %v605
        %v607 = vpop.f32.mrb[0].mxu0
        %v608 = vadd.f32 0.0, %v607
        %609 = vmatprep.mubr.f32.mxu0 0.0
        %610 = vmatmul.mubr.f32.gmra.mrb[0].mxu0 %v432
        %v611 = vpop.f32.mrb[0].mxu0
        %v612 = vadd.f32 0.0, %v611
        %v613 = vpop.f32.mrb[0].mxu0
        %v614 = vadd.f32 0.0, %v613
        %615 = vmatprep.mubr.f32.mxu0 0.0
        %616 = vmatmul.mubr.f32.gmra.mrb[0].mxu0 %v435
        %v617 = vpop.f32.mrb[0].mxu0
        %v618 = vadd.f32 0.0, %v617
        %v619 = vpop.f32.mrb[0].mxu0
        %v620 = vadd.f32 0.0, %v619
        %621 = vmatprep.mubr.f32.mxu0 0.0
        %622 = vmatmul.mubr.f32.gmra.mrb[0].mxu0 %v438
        %v623 = vpop.f32.mrb[0].mxu0
        %v624 = vadd.f32 0.0, %v623
        %v625 = vpop.f32.mrb[0].mxu0
        %v626 = vadd.f32 0.0, %v625
        %627 = vmatprep.mubr.f32.mxu0 0.0
        %628 = vmatmul.mubr.f32.gmra.mrb[0].mxu0 %v441
        %v629 = vpop.f32.mrb[0].mxu0
        %v630 = vadd.f32 0.0, %v629
        %v631 = vpop.f32.mrb[0].mxu0
        %v632 = vadd.f32 0.0, %v631
        %633 = vmatprep.mubr.f32.mxu0 0.0
        %634 = vmatmul.mubr.f32.gmra.mrb[0].mxu0 %v444
        %v635 = vpop.f32.mrb[0].mxu0
        %v636 = vadd.f32 0.0, %v635
        %v637 = vpop.f32.mrb[0].mxu0
        %v638 = vadd.f32 0.0, %v637
        %639 = vmatprep.mubr.f32.mxu0 0.0
        %640 = vmatmul.mubr.f32.gmra.mrb[0].mxu0 %v447
        %v641 = vpop.f32.mrb[0].mxu0
        %v642 = vadd.f32 0.0, %v641
        %v643 = vpop.f32.mrb[0].mxu0
        %v644 = vadd.f32 0.0, %v643
        %645 = vmatprep.mubr.f32.mxu0 0.0
        %646 = vmatmul.mubr.f32.gmra.mrb[0].mxu0 %v450
        %v647 = vpop.f32.mrb[0].mxu0
        %v648 = vadd.f32 0.0, %v647
        %v649 = vpop.f32.mrb[0].mxu0
        %v650 = vadd.f32 0.0, %v649
        %651 = vmatprep.mubr.f32.mxu0 0.0
        %652 = vmatmul.mubr.f32.gmra.mrb[0].mxu0 %v453
        %v653 = vpop.f32.mrb[0].mxu0
        %v654 = vadd.f32 0.0, %v653
        %v655 = vpop.f32.mrb[0].mxu0
        %v656 = vadd.f32 0.0, %v655
        %657 = vmatprep.mubr.f32.mxu0 0.0
        %658 = vmatmul.mubr.f32.gmra.mrb[0].mxu0 %v456
        %v659 = vpop.f32.mrb[0].mxu0
        %v660 = vadd.f32 0.0, %v659
        %v661 = vpop.f32.mrb[0].mxu0
        %v662 = vadd.f32 0.0, %v661
        %663 = vmatprep.mubr.f32.mxu0 0.0
        %664 = vmatmul.mubr.f32.gmra.mrb[0].mxu0 %v459
        %v665 = vpop.f32.mrb[0].mxu0
        %v666 = vadd.f32 0.0, %v665
        %v667 = vpop.f32.mrb[0].mxu0
        %v668 = vadd.f32 0.0, %v667
        %669 = vmatprep.mubr.f32.mxu0 0.0
        %670 = vmatmul.mubr.f32.gmra.mrb[0].mxu0 %v462
        %v671 = vpop.f32.mrb[0].mxu0
        %v672 = vadd.f32 0.0, %v671
        %v673 = vpop.f32.mrb[0].mxu0
        %v674 = vadd.f32 0.0, %v673
        %675 = vmatprep.mubr.f32.mxu0 0.0
        %676 = vmatmul.mubr.f32.gmra.mrb[0].mxu0 %v465
        %v677 = vpop.f32.mrb[0].mxu0
        %v678 = vadd.f32 0.0, %v677
        %v679 = vpop.f32.mrb[0].mxu0
        %v680 = vadd.f32 0.0, %v679
        %681 = vmatprep.mubr.f32.mxu0 0.0
        %682 = vmatmul.mubr.f32.gmra.mrb[0].mxu0 %v468
        %v683 = vpop.f32.mrb[0].mxu0
        %v684 = vadd.f32 0.0, %v683
        %v685 = vpop.f32.mrb[0].mxu0
        %v686 = vadd.f32 0.0, %v685
        %687 = vmatprep.mubr.f32.mxu0 0.0
        %688 = vmatmul.mubr.f32.gmra.mrb[0].mxu0 %v471
        %v689 = vpop.f32.mrb[0].mxu0
        %v690 = vadd.f32 0.0, %v689
        %v691 = vpop.f32.mrb[0].mxu0
        %v692 = vadd.f32 0.0, %v691
        %693 = vmatprep.mubr.f32.mxu0 0.0
        %694 = vmatmul.mubr.f32.gmra.mrb[0].mxu0 %v474
        %v695 = vpop.f32.mrb[0].mxu0
        %v696 = vadd.f32 0.0, %v695
        %v697 = vpop.f32.mrb[0].mxu0
        %v698 = vadd.f32 0.0, %v697
        %699 = vmatprep.mubr.f32.mxu0 0.0
        %700 = vmatmul.mubr.f32.gmra.mrb[0].mxu0 %v477
        %v701 = vpop.f32.mrb[0].mxu0
        %v702 = vadd.f32 0.0, %v701
        %v703 = vpop.f32.mrb[0].mxu0
        %v704 = vadd.f32 0.0, %v703
        %705 = vmatprep.mubr.f32.mxu0 0.0
        %706 = vmatmul.mubr.f32.gmra.mrb[0].mxu0 %v480
        %v707 = vpop.f32.mrb[0].mxu0
        %v708 = vadd.f32 0.0, %v707
        %v709 = vpop.f32.mrb[0].mxu0
        %v710 = vadd.f32 0.0, %v709
        %711 = vmatprep.mubr.f32.mxu0 0.0
        %712 = vmatmul.mubr.f32.gmra.mrb[0].mxu0 %v483
        %v713 = vpop.f32.mrb[0].mxu0
        %v714 = vadd.f32 0.0, %v713
        %v715 = vpop.f32.mrb[0].mxu0
        %v716 = vadd.f32 0.0, %v715
        %717 = vdwg.mxu0
        %v718 = vld [vmem:[%s249] sm:$0xff]
        %v719 = vld [vmem:[%s249 + $0x8] sm:$0xff]
        %v720 = vld [vmem:[%s249 + $0x10] sm:$0xff]
        %v721 = vld [vmem:[%s249 + $0x18] sm:$0xff]
        %v722 = vld [vmem:[%s249 + $0x20] sm:$0xff]
        %v723 = vld [vmem:[%s249 + $0x28] sm:$0xff]
        %v724 = vld [vmem:[%s249 + $0x30] sm:$0xff]
        %v725 = vld [vmem:[%s249 + $0x38] sm:$0xff]
        %v726 = vld [vmem:[%s249 + $0x40] sm:$0xff]
        %v727 = vld [vmem:[%s249 + $0x48] sm:$0xff]
        %v728 = vld [vmem:[%s249 + $0x50] sm:$0xff]
        %v729 = vld [vmem:[%s249 + $0x58] sm:$0xff]
        %v730 = vld [vmem:[%s249 + $0x60] sm:$0xff]
        %v731 = vld [vmem:[%s249 + $0x68] sm:$0xff]
        %v732 = vld [vmem:[%s249 + $0x70] sm:$0xff]
        %v733 = vld [vmem:[%s249 + $0x78] sm:$0xff]
        %v734 = vld [vmem:[%s249 + $0x80] sm:$0xff]
        %v735 = vld [vmem:[%s249 + $0x88] sm:$0xff]
        %v736 = vld [vmem:[%s249 + $0x90] sm:$0xff]
        %v737 = vld [vmem:[%s249 + $0x98] sm:$0xff]
        %v738 = vld [vmem:[%s249 + $0xa0] sm:$0xff]
        %v739 = vld [vmem:[%s249 + $0xa8] sm:$0xff]
        %v740 = vld [vmem:[%s249 + $0xb0] sm:$0xff]
        %v741 = vld [vmem:[%s249 + $0xb8] sm:$0xff]
        %v742 = vld [vmem:[%s249 + $0xc0] sm:$0xff]
        %v743 = vld [vmem:[%s249 + $0xc8] sm:$0xff]
        %v744 = vld [vmem:[%s249 + $0xd0] sm:$0xff]
        %v745 = vld [vmem:[%s249 + $0xd8] sm:$0xff]
        %v746 = vld [vmem:[%s249 + $0xe0] sm:$0xff]
        %v747 = vld [vmem:[%s249 + $0xe8] sm:$0xff]
        %v748 = vld [vmem:[%s249 + $0xf0] sm:$0xff]
        %v749 = vld [vmem:[%s249 + $0xf8] sm:$0xff]
        %v750 = vld [vmem:[%s249 + $0x100] sm:$0xff]
        %v751 = vld [vmem:[%s249 + $0x108] sm:$0xff]
        %v752 = vld [vmem:[%s249 + $0x110] sm:$0xff]
        %v753 = vld [vmem:[%s249 + $0x118] sm:$0xff]
        %v754 = vld [vmem:[%s249 + $0x120] sm:$0xff]
        %v755 = vld [vmem:[%s249 + $0x128] sm:$0xff]
        %v756 = vld [vmem:[%s249 + $0x130] sm:$0xff]
        %v757 = vld [vmem:[%s249 + $0x138] sm:$0xff]
        %v758 = vld [vmem:[%s249 + $0x140] sm:$0xff]
        %v759 = vld [vmem:[%s249 + $0x148] sm:$0xff]
        %v760 = vld [vmem:[%s249 + $0x150] sm:$0xff]
        %v761 = vld [vmem:[%s249 + $0x158] sm:$0xff]
        %v762 = vld [vmem:[%s249 + $0x160] sm:$0xff]
        %v763 = vld [vmem:[%s249 + $0x168] sm:$0xff]
        %v764 = vld [vmem:[%s249 + $0x170] sm:$0xff]
        %v765 = vld [vmem:[%s249 + $0x178] sm:$0xff]
        %v766 = vld [vmem:[%s249 + $0x180] sm:$0xff]
        %v767 = vld [vmem:[%s249 + $0x188] sm:$0xff]
        %v768 = vld [vmem:[%s249 + $0x190] sm:$0xff]
        %v769 = vld [vmem:[%s249 + $0x198] sm:$0xff]
        %v770 = vld [vmem:[%s249 + $0x1a0] sm:$0xff]
        %v771 = vld [vmem:[%s249 + $0x1a8] sm:$0xff]
        %v772 = vld [vmem:[%s249 + $0x1b0] sm:$0xff]
        %v773 = vld [vmem:[%s249 + $0x1b8] sm:$0xff]
        %v774 = vstv %s313
        %v775 = vmul.f32 %v774, %v552
        %v776 = vmul.f32 %v774, %v554
        %v777 = vmul.f32 %v774, %v558
        %v778 = vmul.f32 %v774, %v560
        %v779 = vmul.f32 %v774, %v564
        %v780 = vmul.f32 %v774, %v566
        %v781 = vmul.f32 %v774, %v570
        %v782 = vmul.f32 %v774, %v572
        %v783 = vmul.f32 %v774, %v576
        %v784 = vmul.f32 %v774, %v578
        %v785 = vmul.f32 %v774, %v582
        %v786 = vmul.f32 %v774, %v584
        %v787 = vmul.f32 %v774, %v588
        %v788 = vmul.f32 %v774, %v590
        %v789 = vmul.f32 %v774, %v594
        %v790 = vmul.f32 %v774, %v596
        %v791 = vmul.f32 %v774, %v600
        %v792 = vmul.f32 %v774, %v602
        %v793 = vmul.f32 %v774, %v606
        %v794 = vmul.f32 %v774, %v608
        %v795 = vmul.f32 %v774, %v612
        %v796 = vmul.f32 %v774, %v614
        %v797 = vmul.f32 %v774, %v618
        %v798 = vmul.f32 %v774, %v620
        %v799 = vmul.f32 %v774, %v624
        %v800 = vmul.f32 %v774, %v626
        %v801 = vmul.f32 %v774, %v630
        %v802 = vmul.f32 %v774, %v632
        %v803 = vmul.f32 %v774, %v636
        %v804 = vmul.f32 %v774, %v638
        %v805 = vmul.f32 %v774, %v642
        %v806 = vmul.f32 %v774, %v644
        %v807 = vmul.f32 %v774, %v648
        %v808 = vmul.f32 %v774, %v650
        %v809 = vmul.f32 %v774, %v654
        %v810 = vmul.f32 %v774, %v656
        %v811 = vmul.f32 %v774, %v660
        %v812 = vmul.f32 %v774, %v662
        %v813 = vmul.f32 %v774, %v666
        %v814 = vmul.f32 %v774, %v668
        %v815 = vmul.f32 %v774, %v672
        %v816 = vmul.f32 %v774, %v674
        %v817 = vmul.f32 %v774, %v678
        %v818 = vmul.f32 %v774, %v680
        %v819 = vmul.f32 %v774, %v684
        %v820 = vmul.f32 %v774, %v686
        %v821 = vmul.f32 %v774, %v690
        %v822 = vmul.f32 %v774, %v692
        %v823 = vmul.f32 %v774, %v696
        %v824 = vmul.f32 %v774, %v698
        %v825 = vmul.f32 %v774, %v702
        %v826 = vmul.f32 %v774, %v704
        %v827 = vmul.f32 %v774, %v708
        %v828 = vmul.f32 %v774, %v710
        %v829 = vmul.f32 %v774, %v714
        %v830 = vmul.f32 %v774, %v716
        %v831 = vstv %s280
        %v832 = vmul.f32 %v831, %v718
        %v833 = vmul.f32 %v831, %v719
        %v834 = vmul.f32 %v831, %v720
        %v835 = vmul.f32 %v831, %v721
        %v836 = vmul.f32 %v831, %v722
        %v837 = vmul.f32 %v831, %v723
        %v838 = vmul.f32 %v831, %v724
        %v839 = vmul.f32 %v831, %v725
        %v840 = vmul.f32 %v831, %v726
        %v841 = vmul.f32 %v831, %v727
        %v842 = vmul.f32 %v831, %v728
        %v843 = vmul.f32 %v831, %v729
        %v844 = vmul.f32 %v831, %v730
        %v845 = vmul.f32 %v831, %v731
        %v846 = vmul.f32 %v831, %v732
        %v847 = vmul.f32 %v831, %v733
        %v848 = vmul.f32 %v831, %v734
        %v849 = vmul.f32 %v831, %v735
        %v850 = vmul.f32 %v831, %v736
        %v851 = vmul.f32 %v831, %v737
        %v852 = vmul.f32 %v831, %v738
        %v853 = vmul.f32 %v831, %v739
        %v854 = vmul.f32 %v831, %v740
        %v855 = vmul.f32 %v831, %v741
        %v856 = vmul.f32 %v831, %v742
        %v857 = vmul.f32 %v831, %v743
        %v858 = vmul.f32 %v831, %v744
        %v859 = vmul.f32 %v831, %v745
        %v860 = vmul.f32 %v831, %v746
        %v861 = vmul.f32 %v831, %v747
        %v862 = vmul.f32 %v831, %v748
        %v863 = vmul.f32 %v831, %v749
        %v864 = vmul.f32 %v831, %v750
        %v865 = vmul.f32 %v831, %v751
        %v866 = vmul.f32 %v831, %v752
        %v867 = vmul.f32 %v831, %v753
        %v868 = vmul.f32 %v831, %v754
        %v869 = vmul.f32 %v831, %v755
        %v870 = vmul.f32 %v831, %v756
        %v871 = vmul.f32 %v831, %v757
        %v872 = vmul.f32 %v831, %v758
        %v873 = vmul.f32 %v831, %v759
        %v874 = vmul.f32 %v831, %v760
        %v875 = vmul.f32 %v831, %v761
        %v876 = vmul.f32 %v831, %v762
        %v877 = vmul.f32 %v831, %v763
        %v878 = vmul.f32 %v831, %v764
        %v879 = vmul.f32 %v831, %v765
        %v880 = vmul.f32 %v831, %v766
        %v881 = vmul.f32 %v831, %v767
        %v882 = vmul.f32 %v831, %v768
        %v883 = vmul.f32 %v831, %v769
        %v884 = vmul.f32 %v831, %v770
        %v885 = vmul.f32 %v831, %v771
        %v886 = vmul.f32 %v831, %v772
        %v887 = vmul.f32 %v831, %v773
        %v888 = vadd.f32 %v775, %v832
        %v889 = vadd.f32 %v776, %v833
        %v890 = vadd.f32 %v777, %v834
        %v891 = vadd.f32 %v778, %v835
        %v892 = vadd.f32 %v779, %v836
        %v893 = vadd.f32 %v780, %v837
        %v894 = vadd.f32 %v781, %v838
        %v895 = vadd.f32 %v782, %v839
        %v896 = vadd.f32 %v783, %v840
        %v897 = vadd.f32 %v784, %v841
        %v898 = vadd.f32 %v785, %v842
        %v899 = vadd.f32 %v786, %v843
        %v900 = vadd.f32 %v787, %v844
        %v901 = vadd.f32 %v788, %v845
        %v902 = vadd.f32 %v789, %v846
        %v903 = vadd.f32 %v790, %v847
        %v904 = vadd.f32 %v791, %v848
        %v905 = vadd.f32 %v792, %v849
        %v906 = vadd.f32 %v793, %v850
        %v907 = vadd.f32 %v794, %v851
        %v908 = vadd.f32 %v795, %v852
        %v909 = vadd.f32 %v796, %v853
        %v910 = vadd.f32 %v797, %v854
        %v911 = vadd.f32 %v798, %v855
        %v912 = vadd.f32 %v799, %v856
        %v913 = vadd.f32 %v800, %v857
        %v914 = vadd.f32 %v801, %v858
        %v915 = vadd.f32 %v802, %v859
        %v916 = vadd.f32 %v803, %v860
        %v917 = vadd.f32 %v804, %v861
        %v918 = vadd.f32 %v805, %v862
        %v919 = vadd.f32 %v806, %v863
        %v920 = vadd.f32 %v807, %v864
        %v921 = vadd.f32 %v808, %v865
        %v922 = vadd.f32 %v809, %v866
        %v923 = vadd.f32 %v810, %v867
        %v924 = vadd.f32 %v811, %v868
        %v925 = vadd.f32 %v812, %v869
        %v926 = vadd.f32 %v813, %v870
        %v927 = vadd.f32 %v814, %v871
        %v928 = vadd.f32 %v815, %v872
        %v929 = vadd.f32 %v816, %v873
        %v930 = vadd.f32 %v817, %v874
        %v931 = vadd.f32 %v818, %v875
        %v932 = vadd.f32 %v819, %v876
        %v933 = vadd.f32 %v820, %v877
        %v934 = vadd.f32 %v821, %v878
        %v935 = vadd.f32 %v822, %v879
        %v936 = vadd.f32 %v823, %v880
        %v937 = vadd.f32 %v824, %v881
        %v938 = vadd.f32 %v825, %v882
        %v939 = vadd.f32 %v826, %v883
        %v940 = vadd.f32 %v827, %v884
        %v941 = vadd.f32 %v828, %v885
        %v942 = vadd.f32 %v829, %v886
        %v943 = vadd.f32 %v830, %v887
        %v944 = vstv %s314
        %v945 = vadd.f32 %v888, %v944
        %v946 = vadd.f32 %v889, %v944
        %v947 = vadd.f32 %v890, %v944
        %v948 = vadd.f32 %v891, %v944
        %v949 = vadd.f32 %v892, %v944
        %v950 = vadd.f32 %v893, %v944
        %v951 = vadd.f32 %v894, %v944
        %v952 = vadd.f32 %v895, %v944
        %v953 = vadd.f32 %v896, %v944
        %v954 = vadd.f32 %v897, %v944
        %v955 = vadd.f32 %v898, %v944
        %v956 = vadd.f32 %v899, %v944
        %v957 = vadd.f32 %v900, %v944
        %v958 = vadd.f32 %v901, %v944
        %v959 = vadd.f32 %v902, %v944
        %v960 = vadd.f32 %v903, %v944
        %v961 = vadd.f32 %v904, %v944
        %v962 = vadd.f32 %v905, %v944
        %v963 = vadd.f32 %v906, %v944
        %v964 = vadd.f32 %v907, %v944
        %v965 = vadd.f32 %v908, %v944
        %v966 = vadd.f32 %v909, %v944
        %v967 = vadd.f32 %v910, %v944
        %v968 = vadd.f32 %v911, %v944
        %v969 = vadd.f32 %v912, %v944
        %v970 = vadd.f32 %v913, %v944
        %v971 = vadd.f32 %v914, %v944
        %v972 = vadd.f32 %v915, %v944
        %v973 = vadd.f32 %v916, %v944
        %v974 = vadd.f32 %v917, %v944
        %v975 = vadd.f32 %v918, %v944
        %v976 = vadd.f32 %v919, %v944
        %v977 = vadd.f32 %v920, %v944
        %v978 = vadd.f32 %v921, %v944
        %v979 = vadd.f32 %v922, %v944
        %v980 = vadd.f32 %v923, %v944
        %v981 = vadd.f32 %v924, %v944
        %v982 = vadd.f32 %v925, %v944
        %v983 = vadd.f32 %v926, %v944
        %v984 = vadd.f32 %v927, %v944
        %v985 = vadd.f32 %v928, %v944
        %v986 = vadd.f32 %v929, %v944
        %v987 = vadd.f32 %v930, %v944
        %v988 = vadd.f32 %v931, %v944
        %v989 = vadd.f32 %v932, %v944
        %v990 = vadd.f32 %v933, %v944
        %v991 = vadd.f32 %v934, %v944
        %v992 = vadd.f32 %v935, %v944
        %v993 = vadd.f32 %v936, %v944
        %v994 = vadd.f32 %v937, %v944
        %v995 = vadd.f32 %v938, %v944
        %v996 = vadd.f32 %v939, %v944
        %v997 = vadd.f32 %v940, %v944
        %v998 = vadd.f32 %v941, %v944
        %v999 = vadd.f32 %v942, %v944
        %v1000 = vadd.f32 %v943, %v944
        %1001 = vst [vmem:[%s278] sm:$0xff] %v945
        %vm1002 = vcmask 785408
        %1003 = vst.msk [vmem:[%s278 + $0x8] sm:$0xff] %vm1002, %v946
        %1004 = vst [vmem:[%s278 + $0x10] sm:$0xff] %v947
        %1005 = vst.msk [vmem:[%s278 + $0x18] sm:$0xff] %vm1002, %v948
        %1006 = vst [vmem:[%s278 + $0x20] sm:$0xff] %v949
        %1007 = vst.msk [vmem:[%s278 + $0x28] sm:$0xff] %vm1002, %v950
        %1008 = vst [vmem:[%s278 + $0x30] sm:$0xff] %v951
        %1009 = vst.msk [vmem:[%s278 + $0x38] sm:$0xff] %vm1002, %v952
        %1010 = vst [vmem:[%s278 + $0x40] sm:$0xff] %v953
        %1011 = vst.msk [vmem:[%s278 + $0x48] sm:$0xff] %vm1002, %v954
        %1012 = vst [vmem:[%s278 + $0x50] sm:$0xff] %v955
        %1013 = vst.msk [vmem:[%s278 + $0x58] sm:$0xff] %vm1002, %v956
        %1014 = vst [vmem:[%s278 + $0x60] sm:$0xff] %v957
        %1015 = vst.msk [vmem:[%s278 + $0x68] sm:$0xff] %vm1002, %v958
        %1016 = vst [vmem:[%s278 + $0x70] sm:$0xff] %v959
        %1017 = vst.msk [vmem:[%s278 + $0x78] sm:$0xff] %vm1002, %v960
        %1018 = vst [vmem:[%s278 + $0x80] sm:$0xff] %v961
        %1019 = vst.msk [vmem:[%s278 + $0x88] sm:$0xff] %vm1002, %v962
        %1020 = vst [vmem:[%s278 + $0x90] sm:$0xff] %v963
        %1021 = vst.msk [vmem:[%s278 + $0x98] sm:$0xff] %vm1002, %v964
        %1022 = vst [vmem:[%s278 + $0xa0] sm:$0xff] %v965
        %1023 = vst.msk [vmem:[%s278 + $0xa8] sm:$0xff] %vm1002, %v966
        %1024 = vst [vmem:[%s278 + $0xb0] sm:$0xff] %v967
        %1025 = vst.msk [vmem:[%s278 + $0xb8] sm:$0xff] %vm1002, %v968
        %1026 = vst [vmem:[%s278 + $0xc0] sm:$0xff] %v969
        %1027 = vst.msk [vmem:[%s278 + $0xc8] sm:$0xff] %vm1002, %v970
        %1028 = vst [vmem:[%s278 + $0xd0] sm:$0xff] %v971
        %1029 = vst.msk [vmem:[%s278 + $0xd8] sm:$0xff] %vm1002, %v972
        %1030 = vst [vmem:[%s278 + $0xe0] sm:$0xff] %v973
        %1031 = vst.msk [vmem:[%s278 + $0xe8] sm:$0xff] %vm1002, %v974
        %1032 = vst [vmem:[%s278 + $0xf0] sm:$0xff] %v975
        %1033 = vst.msk [vmem:[%s278 + $0xf8] sm:$0xff] %vm1002, %v976
        %1034 = vst [vmem:[%s278 + $0x100] sm:$0xff] %v977
        %1035 = vst.msk [vmem:[%s278 + $0x108] sm:$0xff] %vm1002, %v978
        %1036 = vst [vmem:[%s278 + $0x110] sm:$0xff] %v979
        %1037 = vst.msk [vmem:[%s278 + $0x118] sm:$0xff] %vm1002, %v980
        %1038 = vst [vmem:[%s278 + $0x120] sm:$0xff] %v981
        %1039 = vst.msk [vmem:[%s278 + $0x128] sm:$0xff] %vm1002, %v982
        %1040 = vst [vmem:[%s278 + $0x130] sm:$0xff] %v983
        %1041 = vst.msk [vmem:[%s278 + $0x138] sm:$0xff] %vm1002, %v984
        %1042 = vst [vmem:[%s278 + $0x140] sm:$0xff] %v985
        %1043 = vst.msk [vmem:[%s278 + $0x148] sm:$0xff] %vm1002, %v986
        %1044 = vst [vmem:[%s278 + $0x150] sm:$0xff] %v987
        %1045 = vst.msk [vmem:[%s278 + $0x158] sm:$0xff] %vm1002, %v988
        %1046 = vst [vmem:[%s278 + $0x160] sm:$0xff] %v989
        %1047 = vst.msk [vmem:[%s278 + $0x168] sm:$0xff] %vm1002, %v990
        %1048 = vst [vmem:[%s278 + $0x170] sm:$0xff] %v991
        %1049 = vst.msk [vmem:[%s278 + $0x178] sm:$0xff] %vm1002, %v992
        %1050 = vst [vmem:[%s278 + $0x180] sm:$0xff] %v993
        %1051 = vst.msk [vmem:[%s278 + $0x188] sm:$0xff] %vm1002, %v994
        %1052 = vst [vmem:[%s278 + $0x190] sm:$0xff] %v995
        %1053 = vst.msk [vmem:[%s278 + $0x198] sm:$0xff] %vm1002, %v996
        %1054 = vst [vmem:[%s278 + $0x1a0] sm:$0xff] %v997
        %1055 = vst.msk [vmem:[%s278 + $0x1a8] sm:$0xff] %vm1002, %v998
        %1056 = vst [vmem:[%s278 + $0x1b0] sm:$0xff] %v999
        %1057 = vst.msk [vmem:[%s278 + $0x1b8] sm:$0xff] %vm1002, %v1000
        %s1058 = sld [smem:[#allocation4 + $0x1]]
        %s1059 = sld [smem:[#allocation4 + $0x4]]
        %s1060 = scalar_lea.vmem %s236, 16 [#allocation5]
        %v1061 = vld [vmem:[%s1060] sm:$0xff]
        %v1062 = vld [vmem:[%s1060 + $0x8] sm:$0xff]
        %v1064 = vsel %vm317, %v1061, 0
        %v1067 = vsel %vm317, %v1062, 0
        %1069 = vmatprep.subr.mxu0 %v310
        %1070 = vmatpush1.msra.mxu0 %v309
        %1071 = vmatprep.subr.mxu0 %v312
        %1072 = vmatpush1.msra.mxu0 %v311
        %1073 = vmatprep.subr.mxu0 0.0
        %1074 = vmatpush1.msra.mxu0 0.0
        %1075 = vmatprep.subr.mxu0 0.0
        %1076 = vmatpush1.msra.mxu0 0.0
        %1077 = vmatprep.subr.mxu0 0.0
        %1078 = vmatpush1.msra.mxu0 0.0
        %1079 = vmatprep.subr.mxu0 0.0
        %1080 = vmatpush1.msra.mxu0 0.0
        %1081 = vmatprep.subr.mxu0 0.0
        %1082 = vmatpush1.msra.mxu0 0.0
        %1083 = vmatprep.subr.mxu0 0.0
        %1084 = vmatpush1.msra.mxu0 0.0
        %1085 = vmatprep.subr.mxu0 0.0
        %1086 = vmatpush1.msra.mxu0 0.0
        %1087 = vmatprep.subr.mxu0 0.0
        %1088 = vmatpush1.msra.mxu0 0.0
        %1089 = vmatprep.subr.mxu0 0.0
        %1090 = vmatpush1.msra.mxu0 0.0
        %1091 = vmatprep.subr.mxu0 0.0
        %1092 = vmatpush1.msra.mxu0 0.0
        %1093 = vmatprep.subr.mxu0 0.0
        %1094 = vmatpush1.msra.mxu0 0.0
        %1095 = vmatprep.subr.mxu0 0.0
        %1096 = vmatpush1.msra.mxu0 0.0
        %1097 = vmatprep.subr.mxu0 0.0
        %1098 = vmatpush1.msra.mxu0 0.0
        %1099 = vmatprep.subr.mxu0 0.0
        %1100 = vmatpush1.msra.mxu0 0.0
        %1101 = vmatprep.subr.mxu0 0.0
        %1102 = vmatpush1.msra.mxu0 0.0
        %1103 = vmatprep.subr.mxu0 0.0
        %1104 = vmatpush1.msra.mxu0 0.0
        %1105 = vmatprep.subr.mxu0 0.0
        %1106 = vmatpush1.msra.mxu0 0.0
        %1107 = vmatprep.subr.mxu0 0.0
        %1108 = vmatpush1.msra.mxu0 0.0
        %1109 = vmatprep.subr.mxu0 0.0
        %1110 = vmatpush1.msra.mxu0 0.0
        %1111 = vmatprep.subr.mxu0 0.0
        %1112 = vmatpush1.msra.mxu0 0.0
        %1113 = vmatprep.subr.mxu0 0.0
        %1114 = vmatpush1.msra.mxu0 0.0
        %1115 = vmatprep.subr.mxu0 0.0
        %1116 = vmatpush1.msra.mxu0 0.0
        %1117 = vmatprep.subr.mxu0 0.0
        %1118 = vmatpush1.msra.mxu0 0.0
        %1119 = vmatprep.subr.mxu0 0.0
        %1120 = vmatpush1.msra.mxu0 0.0
        %1121 = vmatprep.subr.mxu0 0.0
        %1122 = vmatpush1.msra.mxu0 0.0
        %1123 = vmatprep.subr.mxu0 0.0
        %1124 = vmatpush1.msra.mxu0 0.0
        %1125 = vmatprep.subr.mxu0 0.0
        %1126 = vmatpush1.msra.mxu0 0.0
        %1127 = vmatprep.subr.mxu0 0.0
        %1128 = vmatpush1.msra.mxu0 0.0
        %1129 = vmatprep.subr.mxu0 0.0
        %1130 = vmatpush1.msra.mxu0 0.0
        %1131 = vmatprep.subr.mxu0 0.0
        %1132 = vmatpush1.msra.mxu0 0.0
        %1133 = vmatprep.mubr.f32.mxu0 0.0
        %1134 = vmatmul.mubr.f32.gmra.mrb[0].mxu0 %v1064
        %v1135 = vpop.f32.mrb[0].mxu0
        %v1136 = vadd.f32 0.0, %v1135
        %v1137 = vpop.f32.mrb[0].mxu0
        %v1138 = vadd.f32 0.0, %v1137
        %1139 = vmatprep.mubr.f32.mxu0 0.0
        %1140 = vmatmul.mubr.f32.gmra.mrb[0].mxu0 %v1067
        %v1141 = vpop.f32.mrb[0].mxu0
        %v1142 = vadd.f32 0.0, %v1141
        %v1143 = vpop.f32.mrb[0].mxu0
        %v1144 = vadd.f32 0.0, %v1143
        %1145 = vdwg.mxu0
        %1146 = vmatprep.subr.mxu0 %v1138
        %1147 = vmatpush1.msra.mxu0 %v1136
        %1148 = vmatprep.subr.mxu0 %v1144
        %1149 = vmatpush1.msra.mxu0 %v1142
        %1150 = vmatprep.subr.mxu0 0.0
        %1151 = vmatpush1.msra.mxu0 0.0
        %1152 = vmatprep.subr.mxu0 0.0
        %1153 = vmatpush1.msra.mxu0 0.0
        %1154 = vmatprep.subr.mxu0 0.0
        %1155 = vmatpush1.msra.mxu0 0.0
        %1156 = vmatprep.subr.mxu0 0.0
        %1157 = vmatpush1.msra.mxu0 0.0
        %1158 = vmatprep.subr.mxu0 0.0
        %1159 = vmatpush1.msra.mxu0 0.0
        %1160 = vmatprep.subr.mxu0 0.0
        %1161 = vmatpush1.msra.mxu0 0.0
        %1162 = vmatprep.subr.mxu0 0.0
        %1163 = vmatpush1.msra.mxu0 0.0
        %1164 = vmatprep.subr.mxu0 0.0
        %1165 = vmatpush1.msra.mxu0 0.0
        %1166 = vmatprep.subr.mxu0 0.0
        %1167 = vmatpush1.msra.mxu0 0.0
        %1168 = vmatprep.subr.mxu0 0.0
        %1169 = vmatpush1.msra.mxu0 0.0
        %1170 = vmatprep.subr.mxu0 0.0
        %1171 = vmatpush1.msra.mxu0 0.0
        %1172 = vmatprep.subr.mxu0 0.0
        %1173 = vmatpush1.msra.mxu0 0.0
        %1174 = vmatprep.subr.mxu0 0.0
        %1175 = vmatpush1.msra.mxu0 0.0
        %1176 = vmatprep.subr.mxu0 0.0
        %1177 = vmatpush1.msra.mxu0 0.0
        %1178 = vmatprep.subr.mxu0 0.0
        %1179 = vmatpush1.msra.mxu0 0.0
        %1180 = vmatprep.subr.mxu0 0.0
        %1181 = vmatpush1.msra.mxu0 0.0
        %1182 = vmatprep.subr.mxu0 0.0
        %1183 = vmatpush1.msra.mxu0 0.0
        %1184 = vmatprep.subr.mxu0 0.0
        %1185 = vmatpush1.msra.mxu0 0.0
        %1186 = vmatprep.subr.mxu0 0.0
        %1187 = vmatpush1.msra.mxu0 0.0
        %1188 = vmatprep.subr.mxu0 0.0
        %1189 = vmatpush1.msra.mxu0 0.0
        %1190 = vmatprep.subr.mxu0 0.0
        %1191 = vmatpush1.msra.mxu0 0.0
        %1192 = vmatprep.subr.mxu0 0.0
        %1193 = vmatpush1.msra.mxu0 0.0
        %1194 = vmatprep.subr.mxu0 0.0
        %1195 = vmatpush1.msra.mxu0 0.0
        %1196 = vmatprep.subr.mxu0 0.0
        %1197 = vmatpush1.msra.mxu0 0.0
        %1198 = vmatprep.subr.mxu0 0.0
        %1199 = vmatpush1.msra.mxu0 0.0
        %1200 = vmatprep.subr.mxu0 0.0
        %1201 = vmatpush1.msra.mxu0 0.0
        %1202 = vmatprep.subr.mxu0 0.0
        %1203 = vmatpush1.msra.mxu0 0.0
        %1204 = vmatprep.subr.mxu0 0.0
        %1205 = vmatpush1.msra.mxu0 0.0
        %1206 = vmatprep.subr.mxu0 0.0
        %1207 = vmatpush1.msra.mxu0 0.0
        %1208 = vmatprep.subr.mxu0 0.0
        %1209 = vmatpush1.msra.mxu0 0.0
        %1210 = vmatprep.mubr.f32.mxu0 0.0
        %1211 = vmatmul.mubr.f32.gmra.mrb[0].mxu0 %v402
        %v1212 = vpop.f32.mrb[0].mxu0
        %v1213 = vadd.f32 0.0, %v1212
        %v1214 = vpop.f32.mrb[0].mxu0
        %v1215 = vadd.f32 0.0, %v1214
        %1216 = vmatprep.mubr.f32.mxu0 0.0
        %1217 = vmatmul.mubr.f32.gmra.mrb[0].mxu0 %v405
        %v1218 = vpop.f32.mrb[0].mxu0
        %v1219 = vadd.f32 0.0, %v1218
        %v1220 = vpop.f32.mrb[0].mxu0
        %v1221 = vadd.f32 0.0, %v1220
        %1222 = vmatprep.mubr.f32.mxu0 0.0
        %1223 = vmatmul.mubr.f32.gmra.mrb[0].mxu0 %v408
        %v1224 = vpop.f32.mrb[0].mxu0
        %v1225 = vadd.f32 0.0, %v1224
        %v1226 = vpop.f32.mrb[0].mxu0
        %v1227 = vadd.f32 0.0, %v1226
        %1228 = vmatprep.mubr.f32.mxu0 0.0
        %1229 = vmatmul.mubr.f32.gmra.mrb[0].mxu0 %v411
        %v1230 = vpop.f32.mrb[0].mxu0
        %v1231 = vadd.f32 0.0, %v1230
        %v1232 = vpop.f32.mrb[0].mxu0
        %v1233 = vadd.f32 0.0, %v1232
        %1234 = vmatprep.mubr.f32.mxu0 0.0
        %1235 = vmatmul.mubr.f32.gmra.mrb[0].mxu0 %v414
        %v1236 = vpop.f32.mrb[0].mxu0
        %v1237 = vadd.f32 0.0, %v1236
        %v1238 = vpop.f32.mrb[0].mxu0
        %v1239 = vadd.f32 0.0, %v1238
        %1240 = vmatprep.mubr.f32.mxu0 0.0
        %1241 = vmatmul.mubr.f32.gmra.mrb[0].mxu0 %v417
        %v1242 = vpop.f32.mrb[0].mxu0
        %v1243 = vadd.f32 0.0, %v1242
        %v1244 = vpop.f32.mrb[0].mxu0
        %v1245 = vadd.f32 0.0, %v1244
        %1246 = vmatprep.mubr.f32.mxu0 0.0
        %1247 = vmatmul.mubr.f32.gmra.mrb[0].mxu0 %v420
        %v1248 = vpop.f32.mrb[0].mxu0
        %v1249 = vadd.f32 0.0, %v1248
        %v1250 = vpop.f32.mrb[0].mxu0
        %v1251 = vadd.f32 0.0, %v1250
        %1252 = vmatprep.mubr.f32.mxu0 0.0
        %1253 = vmatmul.mubr.f32.gmra.mrb[0].mxu0 %v423
        %v1254 = vpop.f32.mrb[0].mxu0
        %v1255 = vadd.f32 0.0, %v1254
        %v1256 = vpop.f32.mrb[0].mxu0
        %v1257 = vadd.f32 0.0, %v1256
        %1258 = vmatprep.mubr.f32.mxu0 0.0
        %1259 = vmatmul.mubr.f32.gmra.mrb[0].mxu0 %v426
        %v1260 = vpop.f32.mrb[0].mxu0
        %v1261 = vadd.f32 0.0, %v1260
        %v1262 = vpop.f32.mrb[0].mxu0
        %v1263 = vadd.f32 0.0, %v1262
        %1264 = vmatprep.mubr.f32.mxu0 0.0
        %1265 = vmatmul.mubr.f32.gmra.mrb[0].mxu0 %v429
        %v1266 = vpop.f32.mrb[0].mxu0
        %v1267 = vadd.f32 0.0, %v1266
        %v1268 = vpop.f32.mrb[0].mxu0
        %v1269 = vadd.f32 0.0, %v1268
        %1270 = vmatprep.mubr.f32.mxu0 0.0
        %1271 = vmatmul.mubr.f32.gmra.mrb[0].mxu0 %v432
        %v1272 = vpop.f32.mrb[0].mxu0
        %v1273 = vadd.f32 0.0, %v1272
        %v1274 = vpop.f32.mrb[0].mxu0
        %v1275 = vadd.f32 0.0, %v1274
        %1276 = vmatprep.mubr.f32.mxu0 0.0
        %1277 = vmatmul.mubr.f32.gmra.mrb[0].mxu0 %v435
        %v1278 = vpop.f32.mrb[0].mxu0
        %v1279 = vadd.f32 0.0, %v1278
        %v1280 = vpop.f32.mrb[0].mxu0
        %v1281 = vadd.f32 0.0, %v1280
        %1282 = vmatprep.mubr.f32.mxu0 0.0
        %1283 = vmatmul.mubr.f32.gmra.mrb[0].mxu0 %v438
        %v1284 = vpop.f32.mrb[0].mxu0
        %v1285 = vadd.f32 0.0, %v1284
        %v1286 = vpop.f32.mrb[0].mxu0
        %v1287 = vadd.f32 0.0, %v1286
        %1288 = vmatprep.mubr.f32.mxu0 0.0
        %1289 = vmatmul.mubr.f32.gmra.mrb[0].mxu0 %v441
        %v1290 = vpop.f32.mrb[0].mxu0
        %v1291 = vadd.f32 0.0, %v1290
        %v1292 = vpop.f32.mrb[0].mxu0
        %v1293 = vadd.f32 0.0, %v1292
        %1294 = vmatprep.mubr.f32.mxu0 0.0
        %1295 = vmatmul.mubr.f32.gmra.mrb[0].mxu0 %v444
        %v1296 = vpop.f32.mrb[0].mxu0
        %v1297 = vadd.f32 0.0, %v1296
        %v1298 = vpop.f32.mrb[0].mxu0
        %v1299 = vadd.f32 0.0, %v1298
        %1300 = vmatprep.mubr.f32.mxu0 0.0
        %1301 = vmatmul.mubr.f32.gmra.mrb[0].mxu0 %v447
        %v1302 = vpop.f32.mrb[0].mxu0
        %v1303 = vadd.f32 0.0, %v1302
        %v1304 = vpop.f32.mrb[0].mxu0
        %v1305 = vadd.f32 0.0, %v1304
        %1306 = vmatprep.mubr.f32.mxu0 0.0
        %1307 = vmatmul.mubr.f32.gmra.mrb[0].mxu0 %v450
        %v1308 = vpop.f32.mrb[0].mxu0
        %v1309 = vadd.f32 0.0, %v1308
        %v1310 = vpop.f32.mrb[0].mxu0
        %v1311 = vadd.f32 0.0, %v1310
        %1312 = vmatprep.mubr.f32.mxu0 0.0
        %1313 = vmatmul.mubr.f32.gmra.mrb[0].mxu0 %v453
        %v1314 = vpop.f32.mrb[0].mxu0
        %v1315 = vadd.f32 0.0, %v1314
        %v1316 = vpop.f32.mrb[0].mxu0
        %v1317 = vadd.f32 0.0, %v1316
        %1318 = vmatprep.mubr.f32.mxu0 0.0
        %1319 = vmatmul.mubr.f32.gmra.mrb[0].mxu0 %v456
        %v1320 = vpop.f32.mrb[0].mxu0
        %v1321 = vadd.f32 0.0, %v1320
        %v1322 = vpop.f32.mrb[0].mxu0
        %v1323 = vadd.f32 0.0, %v1322
        %1324 = vmatprep.mubr.f32.mxu0 0.0
        %1325 = vmatmul.mubr.f32.gmra.mrb[0].mxu0 %v459
        %v1326 = vpop.f32.mrb[0].mxu0
        %v1327 = vadd.f32 0.0, %v1326
        %v1328 = vpop.f32.mrb[0].mxu0
        %v1329 = vadd.f32 0.0, %v1328
        %1330 = vmatprep.mubr.f32.mxu0 0.0
        %1331 = vmatmul.mubr.f32.gmra.mrb[0].mxu0 %v462
        %v1332 = vpop.f32.mrb[0].mxu0
        %v1333 = vadd.f32 0.0, %v1332
        %v1334 = vpop.f32.mrb[0].mxu0
        %v1335 = vadd.f32 0.0, %v1334
        %1336 = vmatprep.mubr.f32.mxu0 0.0
        %1337 = vmatmul.mubr.f32.gmra.mrb[0].mxu0 %v465
        %v1338 = vpop.f32.mrb[0].mxu0
        %v1339 = vadd.f32 0.0, %v1338
        %v1340 = vpop.f32.mrb[0].mxu0
        %v1341 = vadd.f32 0.0, %v1340
        %1342 = vmatprep.mubr.f32.mxu0 0.0
        %1343 = vmatmul.mubr.f32.gmra.mrb[0].mxu0 %v468
        %v1344 = vpop.f32.mrb[0].mxu0
        %v1345 = vadd.f32 0.0, %v1344
        %v1346 = vpop.f32.mrb[0].mxu0
        %v1347 = vadd.f32 0.0, %v1346
        %1348 = vmatprep.mubr.f32.mxu0 0.0
        %1349 = vmatmul.mubr.f32.gmra.mrb[0].mxu0 %v471
        %v1350 = vpop.f32.mrb[0].mxu0
        %v1351 = vadd.f32 0.0, %v1350
        %v1352 = vpop.f32.mrb[0].mxu0
        %v1353 = vadd.f32 0.0, %v1352
        %1354 = vmatprep.mubr.f32.mxu0 0.0
        %1355 = vmatmul.mubr.f32.gmra.mrb[0].mxu0 %v474
        %v1356 = vpop.f32.mrb[0].mxu0
        %v1357 = vadd.f32 0.0, %v1356
        %v1358 = vpop.f32.mrb[0].mxu0
        %v1359 = vadd.f32 0.0, %v1358
        %1360 = vmatprep.mubr.f32.mxu0 0.0
        %1361 = vmatmul.mubr.f32.gmra.mrb[0].mxu0 %v477
        %v1362 = vpop.f32.mrb[0].mxu0
        %v1363 = vadd.f32 0.0, %v1362
        %v1364 = vpop.f32.mrb[0].mxu0
        %v1365 = vadd.f32 0.0, %v1364
        %1366 = vmatprep.mubr.f32.mxu0 0.0
        %1367 = vmatmul.mubr.f32.gmra.mrb[0].mxu0 %v480
        %v1368 = vpop.f32.mrb[0].mxu0
        %v1369 = vadd.f32 0.0, %v1368
        %v1370 = vpop.f32.mrb[0].mxu0
        %v1371 = vadd.f32 0.0, %v1370
        %1372 = vmatprep.mubr.f32.mxu0 0.0
        %1373 = vmatmul.mubr.f32.gmra.mrb[0].mxu0 %v483
        %v1374 = vpop.f32.mrb[0].mxu0
        %v1375 = vadd.f32 0.0, %v1374
        %v1376 = vpop.f32.mrb[0].mxu0
        %v1377 = vadd.f32 0.0, %v1376
        %1378 = vdwg.mxu0
        %s1379 = scalar_lea.vmem %s249, 448 [#allocation10]
        %v1380 = vld [vmem:[%s1379] sm:$0xff]
        %v1381 = vld [vmem:[%s1379 + $0x8] sm:$0xff]
        %v1382 = vld [vmem:[%s1379 + $0x10] sm:$0xff]
        %v1383 = vld [vmem:[%s1379 + $0x18] sm:$0xff]
        %v1384 = vld [vmem:[%s1379 + $0x20] sm:$0xff]
        %v1385 = vld [vmem:[%s1379 + $0x28] sm:$0xff]
        %v1386 = vld [vmem:[%s1379 + $0x30] sm:$0xff]
        %v1387 = vld [vmem:[%s1379 + $0x38] sm:$0xff]
        %v1388 = vld [vmem:[%s1379 + $0x40] sm:$0xff]
        %v1389 = vld [vmem:[%s1379 + $0x48] sm:$0xff]
        %v1390 = vld [vmem:[%s1379 + $0x50] sm:$0xff]
        %v1391 = vld [vmem:[%s1379 + $0x58] sm:$0xff]
        %v1392 = vld [vmem:[%s1379 + $0x60] sm:$0xff]
        %v1393 = vld [vmem:[%s1379 + $0x68] sm:$0xff]
        %v1394 = vld [vmem:[%s1379 + $0x70] sm:$0xff]
        %v1395 = vld [vmem:[%s1379 + $0x78] sm:$0xff]
        %v1396 = vld [vmem:[%s1379 + $0x80] sm:$0xff]
        %v1397 = vld [vmem:[%s1379 + $0x88] sm:$0xff]
        %v1398 = vld [vmem:[%s1379 + $0x90] sm:$0xff]
        %v1399 = vld [vmem:[%s1379 + $0x98] sm:$0xff]
        %v1400 = vld [vmem:[%s1379 + $0xa0] sm:$0xff]
        %v1401 = vld [vmem:[%s1379 + $0xa8] sm:$0xff]
        %v1402 = vld [vmem:[%s1379 + $0xb0] sm:$0xff]
        %v1403 = vld [vmem:[%s1379 + $0xb8] sm:$0xff]
        %v1404 = vld [vmem:[%s1379 + $0xc0] sm:$0xff]
        %v1405 = vld [vmem:[%s1379 + $0xc8] sm:$0xff]
        %v1406 = vld [vmem:[%s1379 + $0xd0] sm:$0xff]
        %v1407 = vld [vmem:[%s1379 + $0xd8] sm:$0xff]
        %v1408 = vld [vmem:[%s1379 + $0xe0] sm:$0xff]
        %v1409 = vld [vmem:[%s1379 + $0xe8] sm:$0xff]
        %v1410 = vld [vmem:[%s1379 + $0xf0] sm:$0xff]
        %v1411 = vld [vmem:[%s1379 + $0xf8] sm:$0xff]
        %v1412 = vld [vmem:[%s1379 + $0x100] sm:$0xff]
        %v1413 = vld [vmem:[%s1379 + $0x108] sm:$0xff]
        %v1414 = vld [vmem:[%s1379 + $0x110] sm:$0xff]
        %v1415 = vld [vmem:[%s1379 + $0x118] sm:$0xff]
        %v1416 = vld [vmem:[%s1379 + $0x120] sm:$0xff]
        %v1417 = vld [vmem:[%s1379 + $0x128] sm:$0xff]
        %v1418 = vld [vmem:[%s1379 + $0x130] sm:$0xff]
        %v1419 = vld [vmem:[%s1379 + $0x138] sm:$0xff]
        %v1420 = vld [vmem:[%s1379 + $0x140] sm:$0xff]
        %v1421 = vld [vmem:[%s1379 + $0x148] sm:$0xff]
        %v1422 = vld [vmem:[%s1379 + $0x150] sm:$0xff]
        %v1423 = vld [vmem:[%s1379 + $0x158] sm:$0xff]
        %v1424 = vld [vmem:[%s1379 + $0x160] sm:$0xff]
        %v1425 = vld [vmem:[%s1379 + $0x168] sm:$0xff]
        %v1426 = vld [vmem:[%s1379 + $0x170] sm:$0xff]
        %v1427 = vld [vmem:[%s1379 + $0x178] sm:$0xff]
        %v1428 = vld [vmem:[%s1379 + $0x180] sm:$0xff]
        %v1429 = vld [vmem:[%s1379 + $0x188] sm:$0xff]
        %v1430 = vld [vmem:[%s1379 + $0x190] sm:$0xff]
        %v1431 = vld [vmem:[%s1379 + $0x198] sm:$0xff]
        %v1432 = vld [vmem:[%s1379 + $0x1a0] sm:$0xff]
        %v1433 = vld [vmem:[%s1379 + $0x1a8] sm:$0xff]
        %v1434 = vld [vmem:[%s1379 + $0x1b0] sm:$0xff]
        %v1435 = vld [vmem:[%s1379 + $0x1b8] sm:$0xff]
        %v1436 = vstv %s1058
        %v1437 = vmul.f32 %v1436, %v1213
        %v1438 = vmul.f32 %v1436, %v1215
        %v1439 = vmul.f32 %v1436, %v1219
        %v1440 = vmul.f32 %v1436, %v1221
        %v1441 = vmul.f32 %v1436, %v1225
        %v1442 = vmul.f32 %v1436, %v1227
        %v1443 = vmul.f32 %v1436, %v1231
        %v1444 = vmul.f32 %v1436, %v1233
        %v1445 = vmul.f32 %v1436, %v1237
        %v1446 = vmul.f32 %v1436, %v1239
        %v1447 = vmul.f32 %v1436, %v1243
        %v1448 = vmul.f32 %v1436, %v1245
        %v1449 = vmul.f32 %v1436, %v1249
        %v1450 = vmul.f32 %v1436, %v1251
        %v1451 = vmul.f32 %v1436, %v1255
        %v1452 = vmul.f32 %v1436, %v1257
        %v1453 = vmul.f32 %v1436, %v1261
        %v1454 = vmul.f32 %v1436, %v1263
        %v1455 = vmul.f32 %v1436, %v1267
        %v1456 = vmul.f32 %v1436, %v1269
        %v1457 = vmul.f32 %v1436, %v1273
        %v1458 = vmul.f32 %v1436, %v1275
        %v1459 = vmul.f32 %v1436, %v1279
        %v1460 = vmul.f32 %v1436, %v1281
        %v1461 = vmul.f32 %v1436, %v1285
        %v1462 = vmul.f32 %v1436, %v1287
        %v1463 = vmul.f32 %v1436, %v1291
        %v1464 = vmul.f32 %v1436, %v1293
        %v1465 = vmul.f32 %v1436, %v1297
        %v1466 = vmul.f32 %v1436, %v1299
        %v1467 = vmul.f32 %v1436, %v1303
        %v1468 = vmul.f32 %v1436, %v1305
        %v1469 = vmul.f32 %v1436, %v1309
        %v1470 = vmul.f32 %v1436, %v1311
        %v1471 = vmul.f32 %v1436, %v1315
        %v1472 = vmul.f32 %v1436, %v1317
        %v1473 = vmul.f32 %v1436, %v1321
        %v1474 = vmul.f32 %v1436, %v1323
        %v1475 = vmul.f32 %v1436, %v1327
        %v1476 = vmul.f32 %v1436, %v1329
        %v1477 = vmul.f32 %v1436, %v1333
        %v1478 = vmul.f32 %v1436, %v1335
        %v1479 = vmul.f32 %v1436, %v1339
        %v1480 = vmul.f32 %v1436, %v1341
        %v1481 = vmul.f32 %v1436, %v1345
        %v1482 = vmul.f32 %v1436, %v1347
        %v1483 = vmul.f32 %v1436, %v1351
        %v1484 = vmul.f32 %v1436, %v1353
        %v1485 = vmul.f32 %v1436, %v1357
        %v1486 = vmul.f32 %v1436, %v1359
        %v1487 = vmul.f32 %v1436, %v1363
        %v1488 = vmul.f32 %v1436, %v1365
        %v1489 = vmul.f32 %v1436, %v1369
        %v1490 = vmul.f32 %v1436, %v1371
        %v1491 = vmul.f32 %v1436, %v1375
        %v1492 = vmul.f32 %v1436, %v1377
        %v1493 = vmul.f32 %v831, %v1380
        %v1494 = vmul.f32 %v831, %v1381
        %v1495 = vmul.f32 %v831, %v1382
        %v1496 = vmul.f32 %v831, %v1383
        %v1497 = vmul.f32 %v831, %v1384
        %v1498 = vmul.f32 %v831, %v1385
        %v1499 = vmul.f32 %v831, %v1386
        %v1500 = vmul.f32 %v831, %v1387
        %v1501 = vmul.f32 %v831, %v1388
        %v1502 = vmul.f32 %v831, %v1389
        %v1503 = vmul.f32 %v831, %v1390
        %v1504 = vmul.f32 %v831, %v1391
        %v1505 = vmul.f32 %v831, %v1392
        %v1506 = vmul.f32 %v831, %v1393
        %v1507 = vmul.f32 %v831, %v1394
        %v1508 = vmul.f32 %v831, %v1395
        %v1509 = vmul.f32 %v831, %v1396
        %v1510 = vmul.f32 %v831, %v1397
        %v1511 = vmul.f32 %v831, %v1398
        %v1512 = vmul.f32 %v831, %v1399
        %v1513 = vmul.f32 %v831, %v1400
        %v1514 = vmul.f32 %v831, %v1401
        %v1515 = vmul.f32 %v831, %v1402
        %v1516 = vmul.f32 %v831, %v1403
        %v1517 = vmul.f32 %v831, %v1404
        %v1518 = vmul.f32 %v831, %v1405
        %v1519 = vmul.f32 %v831, %v1406
        %v1520 = vmul.f32 %v831, %v1407
        %v1521 = vmul.f32 %v831, %v1408
        %v1522 = vmul.f32 %v831, %v1409
        %v1523 = vmul.f32 %v831, %v1410
        %v1524 = vmul.f32 %v831, %v1411
        %v1525 = vmul.f32 %v831, %v1412
        %v1526 = vmul.f32 %v831, %v1413
        %v1527 = vmul.f32 %v831, %v1414
        %v1528 = vmul.f32 %v831, %v1415
        %v1529 = vmul.f32 %v831, %v1416
        %v1530 = vmul.f32 %v831, %v1417
        %v1531 = vmul.f32 %v831, %v1418
        %v1532 = vmul.f32 %v831, %v1419
        %v1533 = vmul.f32 %v831, %v1420
        %v1534 = vmul.f32 %v831, %v1421
        %v1535 = vmul.f32 %v831, %v1422
        %v1536 = vmul.f32 %v831, %v1423
        %v1537 = vmul.f32 %v831, %v1424
        %v1538 = vmul.f32 %v831, %v1425
        %v1539 = vmul.f32 %v831, %v1426
        %v1540 = vmul.f32 %v831, %v1427
        %v1541 = vmul.f32 %v831, %v1428
        %v1542 = vmul.f32 %v831, %v1429
        %v1543 = vmul.f32 %v831, %v1430
        %v1544 = vmul.f32 %v831, %v1431
        %v1545 = vmul.f32 %v831, %v1432
        %v1546 = vmul.f32 %v831, %v1433
        %v1547 = vmul.f32 %v831, %v1434
        %v1548 = vmul.f32 %v831, %v1435
        %v1549 = vadd.f32 %v1437, %v1493
        %v1550 = vadd.f32 %v1438, %v1494
        %v1551 = vadd.f32 %v1439, %v1495
        %v1552 = vadd.f32 %v1440, %v1496
        %v1553 = vadd.f32 %v1441, %v1497
        %v1554 = vadd.f32 %v1442, %v1498
        %v1555 = vadd.f32 %v1443, %v1499
        %v1556 = vadd.f32 %v1444, %v1500
        %v1557 = vadd.f32 %v1445, %v1501
        %v1558 = vadd.f32 %v1446, %v1502
        %v1559 = vadd.f32 %v1447, %v1503
        %v1560 = vadd.f32 %v1448, %v1504
        %v1561 = vadd.f32 %v1449, %v1505
        %v1562 = vadd.f32 %v1450, %v1506
        %v1563 = vadd.f32 %v1451, %v1507
        %v1564 = vadd.f32 %v1452, %v1508
        %v1565 = vadd.f32 %v1453, %v1509
        %v1566 = vadd.f32 %v1454, %v1510
        %v1567 = vadd.f32 %v1455, %v1511
        %v1568 = vadd.f32 %v1456, %v1512
        %v1569 = vadd.f32 %v1457, %v1513
        %v1570 = vadd.f32 %v1458, %v1514
        %v1571 = vadd.f32 %v1459, %v1515
        %v1572 = vadd.f32 %v1460, %v1516
        %v1573 = vadd.f32 %v1461, %v1517
        %v1574 = vadd.f32 %v1462, %v1518
        %v1575 = vadd.f32 %v1463, %v1519
        %v1576 = vadd.f32 %v1464, %v1520
        %v1577 = vadd.f32 %v1465, %v1521
        %v1578 = vadd.f32 %v1466, %v1522
        %v1579 = vadd.f32 %v1467, %v1523
        %v1580 = vadd.f32 %v1468, %v1524
        %v1581 = vadd.f32 %v1469, %v1525
        %v1582 = vadd.f32 %v1470, %v1526
        %v1583 = vadd.f32 %v1471, %v1527
        %v1584 = vadd.f32 %v1472, %v1528
        %v1585 = vadd.f32 %v1473, %v1529
        %v1586 = vadd.f32 %v1474, %v1530
        %v1587 = vadd.f32 %v1475, %v1531
        %v1588 = vadd.f32 %v1476, %v1532
        %v1589 = vadd.f32 %v1477, %v1533
        %v1590 = vadd.f32 %v1478, %v1534
        %v1591 = vadd.f32 %v1479, %v1535
        %v1592 = vadd.f32 %v1480, %v1536
        %v1593 = vadd.f32 %v1481, %v1537
        %v1594 = vadd.f32 %v1482, %v1538
        %v1595 = vadd.f32 %v1483, %v1539
        %v1596 = vadd.f32 %v1484, %v1540
        %v1597 = vadd.f32 %v1485, %v1541
        %v1598 = vadd.f32 %v1486, %v1542
        %v1599 = vadd.f32 %v1487, %v1543
        %v1600 = vadd.f32 %v1488, %v1544
        %v1601 = vadd.f32 %v1489, %v1545
        %v1602 = vadd.f32 %v1490, %v1546
        %v1603 = vadd.f32 %v1491, %v1547
        %v1604 = vadd.f32 %v1492, %v1548
        %v1605 = vstv %s1059
        %v1606 = vadd.f32 %v1549, %v1605
        %v1607 = vadd.f32 %v1550, %v1605
        %v1608 = vadd.f32 %v1551, %v1605
        %v1609 = vadd.f32 %v1552, %v1605
        %v1610 = vadd.f32 %v1553, %v1605
        %v1611 = vadd.f32 %v1554, %v1605
        %v1612 = vadd.f32 %v1555, %v1605
        %v1613 = vadd.f32 %v1556, %v1605
        %v1614 = vadd.f32 %v1557, %v1605
        %v1615 = vadd.f32 %v1558, %v1605
        %v1616 = vadd.f32 %v1559, %v1605
        %v1617 = vadd.f32 %v1560, %v1605
        %v1618 = vadd.f32 %v1561, %v1605
        %v1619 = vadd.f32 %v1562, %v1605
        %v1620 = vadd.f32 %v1563, %v1605
        %v1621 = vadd.f32 %v1564, %v1605
        %v1622 = vadd.f32 %v1565, %v1605
        %v1623 = vadd.f32 %v1566, %v1605
        %v1624 = vadd.f32 %v1567, %v1605
        %v1625 = vadd.f32 %v1568, %v1605
        %v1626 = vadd.f32 %v1569, %v1605
        %v1627 = vadd.f32 %v1570, %v1605
        %v1628 = vadd.f32 %v1571, %v1605
        %v1629 = vadd.f32 %v1572, %v1605
        %v1630 = vadd.f32 %v1573, %v1605
        %v1631 = vadd.f32 %v1574, %v1605
        %v1632 = vadd.f32 %v1575, %v1605
        %v1633 = vadd.f32 %v1576, %v1605
        %v1634 = vadd.f32 %v1577, %v1605
        %v1635 = vadd.f32 %v1578, %v1605
        %v1636 = vadd.f32 %v1579, %v1605
        %v1637 = vadd.f32 %v1580, %v1605
        %v1638 = vadd.f32 %v1581, %v1605
        %v1639 = vadd.f32 %v1582, %v1605
        %v1640 = vadd.f32 %v1583, %v1605
        %v1641 = vadd.f32 %v1584, %v1605
        %v1642 = vadd.f32 %v1585, %v1605
        %v1643 = vadd.f32 %v1586, %v1605
        %v1644 = vadd.f32 %v1587, %v1605
        %v1645 = vadd.f32 %v1588, %v1605
        %v1646 = vadd.f32 %v1589, %v1605
        %v1647 = vadd.f32 %v1590, %v1605
        %v1648 = vadd.f32 %v1591, %v1605
        %v1649 = vadd.f32 %v1592, %v1605
        %v1650 = vadd.f32 %v1593, %v1605
        %v1651 = vadd.f32 %v1594, %v1605
        %v1652 = vadd.f32 %v1595, %v1605
        %v1653 = vadd.f32 %v1596, %v1605
        %v1654 = vadd.f32 %v1597, %v1605
        %v1655 = vadd.f32 %v1598, %v1605
        %v1656 = vadd.f32 %v1599, %v1605
        %v1657 = vadd.f32 %v1600, %v1605
        %v1658 = vadd.f32 %v1601, %v1605
        %v1659 = vadd.f32 %v1602, %v1605
        %v1660 = vadd.f32 %v1603, %v1605
        %v1661 = vadd.f32 %v1604, %v1605
        %s1662 = scalar_lea.vmem %s278, 448 [#allocation11]
        %1663 = vst [vmem:[%s1662] sm:$0xff] %v1606
        %1664 = vst.msk [vmem:[%s1662 + $0x8] sm:$0xff] %vm1002, %v1607
        %1665 = vst [vmem:[%s1662 + $0x10] sm:$0xff] %v1608
        %1666 = vst.msk [vmem:[%s1662 + $0x18] sm:$0xff] %vm1002, %v1609
        %1667 = vst [vmem:[%s1662 + $0x20] sm:$0xff] %v1610
        %1668 = vst.msk [vmem:[%s1662 + $0x28] sm:$0xff] %vm1002, %v1611
        %1669 = vst [vmem:[%s1662 + $0x30] sm:$0xff] %v1612
        %1670 = vst.msk [vmem:[%s1662 + $0x38] sm:$0xff] %vm1002, %v1613
        %1671 = vst [vmem:[%s1662 + $0x40] sm:$0xff] %v1614
        %1672 = vst.msk [vmem:[%s1662 + $0x48] sm:$0xff] %vm1002, %v1615
        %1673 = vst [vmem:[%s1662 + $0x50] sm:$0xff] %v1616
        %1674 = vst.msk [vmem:[%s1662 + $0x58] sm:$0xff] %vm1002, %v1617
        %1675 = vst [vmem:[%s1662 + $0x60] sm:$0xff] %v1618
        %1676 = vst.msk [vmem:[%s1662 + $0x68] sm:$0xff] %vm1002, %v1619
        %1677 = vst [vmem:[%s1662 + $0x70] sm:$0xff] %v1620
        %1678 = vst.msk [vmem:[%s1662 + $0x78] sm:$0xff] %vm1002, %v1621
        %1679 = vst [vmem:[%s1662 + $0x80] sm:$0xff] %v1622
        %1680 = vst.msk [vmem:[%s1662 + $0x88] sm:$0xff] %vm1002, %v1623
        %1681 = vst [vmem:[%s1662 + $0x90] sm:$0xff] %v1624
        %1682 = vst.msk [vmem:[%s1662 + $0x98] sm:$0xff] %vm1002, %v1625
        %1683 = vst [vmem:[%s1662 + $0xa0] sm:$0xff] %v1626
        %1684 = vst.msk [vmem:[%s1662 + $0xa8] sm:$0xff] %vm1002, %v1627
        %1685 = vst [vmem:[%s1662 + $0xb0] sm:$0xff] %v1628
        %1686 = vst.msk [vmem:[%s1662 + $0xb8] sm:$0xff] %vm1002, %v1629
        %1687 = vst [vmem:[%s1662 + $0xc0] sm:$0xff] %v1630
        %1688 = vst.msk [vmem:[%s1662 + $0xc8] sm:$0xff] %vm1002, %v1631
        %1689 = vst [vmem:[%s1662 + $0xd0] sm:$0xff] %v1632
        %1690 = vst.msk [vmem:[%s1662 + $0xd8] sm:$0xff] %vm1002, %v1633
        %1691 = vst [vmem:[%s1662 + $0xe0] sm:$0xff] %v1634
        %1692 = vst.msk [vmem:[%s1662 + $0xe8] sm:$0xff] %vm1002, %v1635
        %1693 = vst [vmem:[%s1662 + $0xf0] sm:$0xff] %v1636
        %1694 = vst.msk [vmem:[%s1662 + $0xf8] sm:$0xff] %vm1002, %v1637
        %1695 = vst [vmem:[%s1662 + $0x100] sm:$0xff] %v1638
        %1696 = vst.msk [vmem:[%s1662 + $0x108] sm:$0xff] %vm1002, %v1639
        %1697 = vst [vmem:[%s1662 + $0x110] sm:$0xff] %v1640
        %1698 = vst.msk [vmem:[%s1662 + $0x118] sm:$0xff] %vm1002, %v1641
        %1699 = vst [vmem:[%s1662 + $0x120] sm:$0xff] %v1642
        %1700 = vst.msk [vmem:[%s1662 + $0x128] sm:$0xff] %vm1002, %v1643
        %1701 = vst [vmem:[%s1662 + $0x130] sm:$0xff] %v1644
        %1702 = vst.msk [vmem:[%s1662 + $0x138] sm:$0xff] %vm1002, %v1645
        %1703 = vst [vmem:[%s1662 + $0x140] sm:$0xff] %v1646
        %1704 = vst.msk [vmem:[%s1662 + $0x148] sm:$0xff] %vm1002, %v1647
        %1705 = vst [vmem:[%s1662 + $0x150] sm:$0xff] %v1648
        %1706 = vst.msk [vmem:[%s1662 + $0x158] sm:$0xff] %vm1002, %v1649
        %1707 = vst [vmem:[%s1662 + $0x160] sm:$0xff] %v1650
        %1708 = vst.msk [vmem:[%s1662 + $0x168] sm:$0xff] %vm1002, %v1651
        %1709 = vst [vmem:[%s1662 + $0x170] sm:$0xff] %v1652
        %1710 = vst.msk [vmem:[%s1662 + $0x178] sm:$0xff] %vm1002, %v1653
        %1711 = vst [vmem:[%s1662 + $0x180] sm:$0xff] %v1654
        %1712 = vst.msk [vmem:[%s1662 + $0x188] sm:$0xff] %vm1002, %v1655
        %1713 = vst [vmem:[%s1662 + $0x190] sm:$0xff] %v1656
        %1714 = vst.msk [vmem:[%s1662 + $0x198] sm:$0xff] %vm1002, %v1657
        %1715 = vst [vmem:[%s1662 + $0x1a0] sm:$0xff] %v1658
        %1716 = vst.msk [vmem:[%s1662 + $0x1a8] sm:$0xff] %vm1002, %v1659
        %1717 = vst [vmem:[%s1662 + $0x1b0] sm:$0xff] %v1660
        %1718 = vst.msk [vmem:[%s1662 + $0x1b8] sm:$0xff] %vm1002, %v1661
        %s1719 = sld [smem:[#allocation4 + $0x2]]
        %s1720 = sld [smem:[#allocation4 + $0x5]]
        %s1721 = scalar_lea.vmem %s236, 32 [#allocation5]
        %v1722 = vld [vmem:[%s1721] sm:$0xff]
        %v1723 = vld [vmem:[%s1721 + $0x8] sm:$0xff]
        %v1725 = vsel %vm317, %v1722, 0
        %v1728 = vsel %vm317, %v1723, 0
        %1730 = vmatprep.subr.mxu0 %v310
        %1731 = vmatpush1.msra.mxu0 %v309
        %1732 = vmatprep.subr.mxu0 %v312
        %1733 = vmatpush1.msra.mxu0 %v311
        %1734 = vmatprep.subr.mxu0 0.0
        %1735 = vmatpush1.msra.mxu0 0.0
        %1736 = vmatprep.subr.mxu0 0.0
        %1737 = vmatpush1.msra.mxu0 0.0
        %1738 = vmatprep.subr.mxu0 0.0
        %1739 = vmatpush1.msra.mxu0 0.0
        %1740 = vmatprep.subr.mxu0 0.0
        %1741 = vmatpush1.msra.mxu0 0.0
        %1742 = vmatprep.subr.mxu0 0.0
        %1743 = vmatpush1.msra.mxu0 0.0
        %1744 = vmatprep.subr.mxu0 0.0
        %1745 = vmatpush1.msra.mxu0 0.0
        %1746 = vmatprep.subr.mxu0 0.0
        %1747 = vmatpush1.msra.mxu0 0.0
        %1748 = vmatprep.subr.mxu0 0.0
        %1749 = vmatpush1.msra.mxu0 0.0
        %1750 = vmatprep.subr.mxu0 0.0
        %1751 = vmatpush1.msra.mxu0 0.0
        %1752 = vmatprep.subr.mxu0 0.0
        %1753 = vmatpush1.msra.mxu0 0.0
        %1754 = vmatprep.subr.mxu0 0.0
        %1755 = vmatpush1.msra.mxu0 0.0
        %1756 = vmatprep.subr.mxu0 0.0
        %1757 = vmatpush1.msra.mxu0 0.0
        %1758 = vmatprep.subr.mxu0 0.0
        %1759 = vmatpush1.msra.mxu0 0.0
        %1760 = vmatprep.subr.mxu0 0.0
        %1761 = vmatpush1.msra.mxu0 0.0
        %1762 = vmatprep.subr.mxu0 0.0
        %1763 = vmatpush1.msra.mxu0 0.0
        %1764 = vmatprep.subr.mxu0 0.0
        %1765 = vmatpush1.msra.mxu0 0.0
        %1766 = vmatprep.subr.mxu0 0.0
        %1767 = vmatpush1.msra.mxu0 0.0
        %1768 = vmatprep.subr.mxu0 0.0
        %1769 = vmatpush1.msra.mxu0 0.0
        %1770 = vmatprep.subr.mxu0 0.0
        %1771 = vmatpush1.msra.mxu0 0.0
        %1772 = vmatprep.subr.mxu0 0.0
        %1773 = vmatpush1.msra.mxu0 0.0
        %1774 = vmatprep.subr.mxu0 0.0
        %1775 = vmatpush1.msra.mxu0 0.0
        %1776 = vmatprep.subr.mxu0 0.0
        %1777 = vmatpush1.msra.mxu0 0.0
        %1778 = vmatprep.subr.mxu0 0.0
        %1779 = vmatpush1.msra.mxu0 0.0
        %1780 = vmatprep.subr.mxu0 0.0
        %1781 = vmatpush1.msra.mxu0 0.0
        %1782 = vmatprep.subr.mxu0 0.0
        %1783 = vmatpush1.msra.mxu0 0.0
        %1784 = vmatprep.subr.mxu0 0.0
        %1785 = vmatpush1.msra.mxu0 0.0
        %1786 = vmatprep.subr.mxu0 0.0
        %1787 = vmatpush1.msra.mxu0 0.0
        %1788 = vmatprep.subr.mxu0 0.0
        %1789 = vmatpush1.msra.mxu0 0.0
        %1790 = vmatprep.subr.mxu0 0.0
        %1791 = vmatpush1.msra.mxu0 0.0
        %1792 = vmatprep.subr.mxu0 0.0
        %1793 = vmatpush1.msra.mxu0 0.0
        %1794 = vmatprep.mubr.f32.mxu0 0.0
        %1795 = vmatmul.mubr.f32.gmra.mrb[0].mxu0 %v1725
        %v1796 = vpop.f32.mrb[0].mxu0
        %v1797 = vadd.f32 0.0, %v1796
        %v1798 = vpop.f32.mrb[0].mxu0
        %v1799 = vadd.f32 0.0, %v1798
        %1800 = vmatprep.mubr.f32.mxu0 0.0
        %1801 = vmatmul.mubr.f32.gmra.mrb[0].mxu0 %v1728
        %v1802 = vpop.f32.mrb[0].mxu0
        %v1803 = vadd.f32 0.0, %v1802
        %v1804 = vpop.f32.mrb[0].mxu0
        %v1805 = vadd.f32 0.0, %v1804
        %1806 = vdwg.mxu0
        %1807 = vmatprep.subr.mxu0 %v1799
        %1808 = vmatpush1.msra.mxu0 %v1797
        %1809 = vmatprep.subr.mxu0 %v1805
        %1810 = vmatpush1.msra.mxu0 %v1803
        %1811 = vmatprep.subr.mxu0 0.0
        %1812 = vmatpush1.msra.mxu0 0.0
        %1813 = vmatprep.subr.mxu0 0.0
        %1814 = vmatpush1.msra.mxu0 0.0
        %1815 = vmatprep.subr.mxu0 0.0
        %1816 = vmatpush1.msra.mxu0 0.0
        %1817 = vmatprep.subr.mxu0 0.0
        %1818 = vmatpush1.msra.mxu0 0.0
        %1819 = vmatprep.subr.mxu0 0.0
        %1820 = vmatpush1.msra.mxu0 0.0
        %1821 = vmatprep.subr.mxu0 0.0
        %1822 = vmatpush1.msra.mxu0 0.0
        %1823 = vmatprep.subr.mxu0 0.0
        %1824 = vmatpush1.msra.mxu0 0.0
        %1825 = vmatprep.subr.mxu0 0.0
        %1826 = vmatpush1.msra.mxu0 0.0
        %1827 = vmatprep.subr.mxu0 0.0
        %1828 = vmatpush1.msra.mxu0 0.0
        %1829 = vmatprep.subr.mxu0 0.0
        %1830 = vmatpush1.msra.mxu0 0.0
        %1831 = vmatprep.subr.mxu0 0.0
        %1832 = vmatpush1.msra.mxu0 0.0
        %1833 = vmatprep.subr.mxu0 0.0
        %1834 = vmatpush1.msra.mxu0 0.0
        %1835 = vmatprep.subr.mxu0 0.0
        %1836 = vmatpush1.msra.mxu0 0.0
        %1837 = vmatprep.subr.mxu0 0.0
        %1838 = vmatpush1.msra.mxu0 0.0
        %1839 = vmatprep.subr.mxu0 0.0
        %1840 = vmatpush1.msra.mxu0 0.0
        %1841 = vmatprep.subr.mxu0 0.0
        %1842 = vmatpush1.msra.mxu0 0.0
        %1843 = vmatprep.subr.mxu0 0.0
        %1844 = vmatpush1.msra.mxu0 0.0
        %1845 = vmatprep.subr.mxu0 0.0
        %1846 = vmatpush1.msra.mxu0 0.0
        %1847 = vmatprep.subr.mxu0 0.0
        %1848 = vmatpush1.msra.mxu0 0.0
        %1849 = vmatprep.subr.mxu0 0.0
        %1850 = vmatpush1.msra.mxu0 0.0
        %1851 = vmatprep.subr.mxu0 0.0
        %1852 = vmatpush1.msra.mxu0 0.0
        %1853 = vmatprep.subr.mxu0 0.0
        %1854 = vmatpush1.msra.mxu0 0.0
        %1855 = vmatprep.subr.mxu0 0.0
        %1856 = vmatpush1.msra.mxu0 0.0
        %1857 = vmatprep.subr.mxu0 0.0
        %1858 = vmatpush1.msra.mxu0 0.0
        %1859 = vmatprep.subr.mxu0 0.0
        %1860 = vmatpush1.msra.mxu0 0.0
        %1861 = vmatprep.subr.mxu0 0.0
        %1862 = vmatpush1.msra.mxu0 0.0
        %1863 = vmatprep.subr.mxu0 0.0
        %1864 = vmatpush1.msra.mxu0 0.0
        %1865 = vmatprep.subr.mxu0 0.0
        %1866 = vmatpush1.msra.mxu0 0.0
        %1867 = vmatprep.subr.mxu0 0.0
        %1868 = vmatpush1.msra.mxu0 0.0
        %1869 = vmatprep.subr.mxu0 0.0
        %1870 = vmatpush1.msra.mxu0 0.0
        %1871 = vmatprep.mubr.f32.mxu0 0.0
        %1872 = vmatmul.mubr.f32.gmra.mrb[0].mxu0 %v402
        %v1873 = vpop.f32.mrb[0].mxu0
        %v1874 = vadd.f32 0.0, %v1873
        %v1875 = vpop.f32.mrb[0].mxu0
        %v1876 = vadd.f32 0.0, %v1875
        %1877 = vmatprep.mubr.f32.mxu0 0.0
        %1878 = vmatmul.mubr.f32.gmra.mrb[0].mxu0 %v405
        %v1879 = vpop.f32.mrb[0].mxu0
        %v1880 = vadd.f32 0.0, %v1879
        %v1881 = vpop.f32.mrb[0].mxu0
        %v1882 = vadd.f32 0.0, %v1881
        %1883 = vmatprep.mubr.f32.mxu0 0.0
        %1884 = vmatmul.mubr.f32.gmra.mrb[0].mxu0 %v408
        %v1885 = vpop.f32.mrb[0].mxu0
        %v1886 = vadd.f32 0.0, %v1885
        %v1887 = vpop.f32.mrb[0].mxu0
        %v1888 = vadd.f32 0.0, %v1887
        %1889 = vmatprep.mubr.f32.mxu0 0.0
        %1890 = vmatmul.mubr.f32.gmra.mrb[0].mxu0 %v411
        %v1891 = vpop.f32.mrb[0].mxu0
        %v1892 = vadd.f32 0.0, %v1891
        %v1893 = vpop.f32.mrb[0].mxu0
        %v1894 = vadd.f32 0.0, %v1893
        %1895 = vmatprep.mubr.f32.mxu0 0.0
        %1896 = vmatmul.mubr.f32.gmra.mrb[0].mxu0 %v414
        %v1897 = vpop.f32.mrb[0].mxu0
        %v1898 = vadd.f32 0.0, %v1897
        %v1899 = vpop.f32.mrb[0].mxu0
        %v1900 = vadd.f32 0.0, %v1899
        %1901 = vmatprep.mubr.f32.mxu0 0.0
        %1902 = vmatmul.mubr.f32.gmra.mrb[0].mxu0 %v417
        %v1903 = vpop.f32.mrb[0].mxu0
        %v1904 = vadd.f32 0.0, %v1903
        %v1905 = vpop.f32.mrb[0].mxu0
        %v1906 = vadd.f32 0.0, %v1905
        %1907 = vmatprep.mubr.f32.mxu0 0.0
        %1908 = vmatmul.mubr.f32.gmra.mrb[0].mxu0 %v420
        %v1909 = vpop.f32.mrb[0].mxu0
        %v1910 = vadd.f32 0.0, %v1909
        %v1911 = vpop.f32.mrb[0].mxu0
        %v1912 = vadd.f32 0.0, %v1911
        %1913 = vmatprep.mubr.f32.mxu0 0.0
        %1914 = vmatmul.mubr.f32.gmra.mrb[0].mxu0 %v423
        %v1915 = vpop.f32.mrb[0].mxu0
        %v1916 = vadd.f32 0.0, %v1915
        %v1917 = vpop.f32.mrb[0].mxu0
        %v1918 = vadd.f32 0.0, %v1917
        %1919 = vmatprep.mubr.f32.mxu0 0.0
        %1920 = vmatmul.mubr.f32.gmra.mrb[0].mxu0 %v426
        %v1921 = vpop.f32.mrb[0].mxu0
        %v1922 = vadd.f32 0.0, %v1921
        %v1923 = vpop.f32.mrb[0].mxu0
        %v1924 = vadd.f32 0.0, %v1923
        %1925 = vmatprep.mubr.f32.mxu0 0.0
        %1926 = vmatmul.mubr.f32.gmra.mrb[0].mxu0 %v429
        %v1927 = vpop.f32.mrb[0].mxu0
        %v1928 = vadd.f32 0.0, %v1927
        %v1929 = vpop.f32.mrb[0].mxu0
        %v1930 = vadd.f32 0.0, %v1929
        %1931 = vmatprep.mubr.f32.mxu0 0.0
        %1932 = vmatmul.mubr.f32.gmra.mrb[0].mxu0 %v432
        %v1933 = vpop.f32.mrb[0].mxu0
        %v1934 = vadd.f32 0.0, %v1933
        %v1935 = vpop.f32.mrb[0].mxu0
        %v1936 = vadd.f32 0.0, %v1935
        %1937 = vmatprep.mubr.f32.mxu0 0.0
        %1938 = vmatmul.mubr.f32.gmra.mrb[0].mxu0 %v435
        %v1939 = vpop.f32.mrb[0].mxu0
        %v1940 = vadd.f32 0.0, %v1939
        %v1941 = vpop.f32.mrb[0].mxu0
        %v1942 = vadd.f32 0.0, %v1941
        %1943 = vmatprep.mubr.f32.mxu0 0.0
        %1944 = vmatmul.mubr.f32.gmra.mrb[0].mxu0 %v438
        %v1945 = vpop.f32.mrb[0].mxu0
        %v1946 = vadd.f32 0.0, %v1945
        %v1947 = vpop.f32.mrb[0].mxu0
        %v1948 = vadd.f32 0.0, %v1947
        %1949 = vmatprep.mubr.f32.mxu0 0.0
        %1950 = vmatmul.mubr.f32.gmra.mrb[0].mxu0 %v441
        %v1951 = vpop.f32.mrb[0].mxu0
        %v1952 = vadd.f32 0.0, %v1951
        %v1953 = vpop.f32.mrb[0].mxu0
        %v1954 = vadd.f32 0.0, %v1953
        %1955 = vmatprep.mubr.f32.mxu0 0.0
        %1956 = vmatmul.mubr.f32.gmra.mrb[0].mxu0 %v444
        %v1957 = vpop.f32.mrb[0].mxu0
        %v1958 = vadd.f32 0.0, %v1957
        %v1959 = vpop.f32.mrb[0].mxu0
        %v1960 = vadd.f32 0.0, %v1959
        %1961 = vmatprep.mubr.f32.mxu0 0.0
        %1962 = vmatmul.mubr.f32.gmra.mrb[0].mxu0 %v447
        %v1963 = vpop.f32.mrb[0].mxu0
        %v1964 = vadd.f32 0.0, %v1963
        %v1965 = vpop.f32.mrb[0].mxu0
        %v1966 = vadd.f32 0.0, %v1965
        %1967 = vmatprep.mubr.f32.mxu0 0.0
        %1968 = vmatmul.mubr.f32.gmra.mrb[0].mxu0 %v450
        %v1969 = vpop.f32.mrb[0].mxu0
        %v1970 = vadd.f32 0.0, %v1969
        %v1971 = vpop.f32.mrb[0].mxu0
        %v1972 = vadd.f32 0.0, %v1971
        %1973 = vmatprep.mubr.f32.mxu0 0.0
        %1974 = vmatmul.mubr.f32.gmra.mrb[0].mxu0 %v453
        %v1975 = vpop.f32.mrb[0].mxu0
        %v1976 = vadd.f32 0.0, %v1975
        %v1977 = vpop.f32.mrb[0].mxu0
        %v1978 = vadd.f32 0.0, %v1977
        %1979 = vmatprep.mubr.f32.mxu0 0.0
        %1980 = vmatmul.mubr.f32.gmra.mrb[0].mxu0 %v456
        %v1981 = vpop.f32.mrb[0].mxu0
        %v1982 = vadd.f32 0.0, %v1981
        %v1983 = vpop.f32.mrb[0].mxu0
        %v1984 = vadd.f32 0.0, %v1983
        %1985 = vmatprep.mubr.f32.mxu0 0.0
        %1986 = vmatmul.mubr.f32.gmra.mrb[0].mxu0 %v459
        %v1987 = vpop.f32.mrb[0].mxu0
        %v1988 = vadd.f32 0.0, %v1987
        %v1989 = vpop.f32.mrb[0].mxu0
        %v1990 = vadd.f32 0.0, %v1989
        %1991 = vmatprep.mubr.f32.mxu0 0.0
        %1992 = vmatmul.mubr.f32.gmra.mrb[0].mxu0 %v462
        %v1993 = vpop.f32.mrb[0].mxu0
        %v1994 = vadd.f32 0.0, %v1993
        %v1995 = vpop.f32.mrb[0].mxu0
        %v1996 = vadd.f32 0.0, %v1995
        %1997 = vmatprep.mubr.f32.mxu0 0.0
        %1998 = vmatmul.mubr.f32.gmra.mrb[0].mxu0 %v465
        %v1999 = vpop.f32.mrb[0].mxu0
        %v2000 = vadd.f32 0.0, %v1999
        %v2001 = vpop.f32.mrb[0].mxu0
        %v2002 = vadd.f32 0.0, %v2001
        %2003 = vmatprep.mubr.f32.mxu0 0.0
        %2004 = vmatmul.mubr.f32.gmra.mrb[0].mxu0 %v468
        %v2005 = vpop.f32.mrb[0].mxu0
        %v2006 = vadd.f32 0.0, %v2005
        %v2007 = vpop.f32.mrb[0].mxu0
        %v2008 = vadd.f32 0.0, %v2007
        %2009 = vmatprep.mubr.f32.mxu0 0.0
        %2010 = vmatmul.mubr.f32.gmra.mrb[0].mxu0 %v471
        %v2011 = vpop.f32.mrb[0].mxu0
        %v2012 = vadd.f32 0.0, %v2011
        %v2013 = vpop.f32.mrb[0].mxu0
        %v2014 = vadd.f32 0.0, %v2013
        %2015 = vmatprep.mubr.f32.mxu0 0.0
        %2016 = vmatmul.mubr.f32.gmra.mrb[0].mxu0 %v474
        %v2017 = vpop.f32.mrb[0].mxu0
        %v2018 = vadd.f32 0.0, %v2017
        %v2019 = vpop.f32.mrb[0].mxu0
        %v2020 = vadd.f32 0.0, %v2019
        %2021 = vmatprep.mubr.f32.mxu0 0.0
        %2022 = vmatmul.mubr.f32.gmra.mrb[0].mxu0 %v477
        %v2023 = vpop.f32.mrb[0].mxu0
        %v2024 = vadd.f32 0.0, %v2023
        %v2025 = vpop.f32.mrb[0].mxu0
        %v2026 = vadd.f32 0.0, %v2025
        %2027 = vmatprep.mubr.f32.mxu0 0.0
        %2028 = vmatmul.mubr.f32.gmra.mrb[0].mxu0 %v480
        %v2029 = vpop.f32.mrb[0].mxu0
        %v2030 = vadd.f32 0.0, %v2029
        %v2031 = vpop.f32.mrb[0].mxu0
        %v2032 = vadd.f32 0.0, %v2031
        %2033 = vmatprep.mubr.f32.mxu0 0.0
        %2034 = vmatmul.mubr.f32.gmra.mrb[0].mxu0 %v483
        %v2035 = vpop.f32.mrb[0].mxu0
        %v2036 = vadd.f32 0.0, %v2035
        %v2037 = vpop.f32.mrb[0].mxu0
        %v2038 = vadd.f32 0.0, %v2037
        %2039 = vdwg.mxu0
        %s2040 = scalar_lea.vmem %s249, 896 [#allocation10]
        %v2041 = vld [vmem:[%s2040] sm:$0xff]
        %v2042 = vld [vmem:[%s2040 + $0x8] sm:$0xff]
        %v2043 = vld [vmem:[%s2040 + $0x10] sm:$0xff]
        %v2044 = vld [vmem:[%s2040 + $0x18] sm:$0xff]
        %v2045 = vld [vmem:[%s2040 + $0x20] sm:$0xff]
        %v2046 = vld [vmem:[%s2040 + $0x28] sm:$0xff]
        %v2047 = vld [vmem:[%s2040 + $0x30] sm:$0xff]
        %v2048 = vld [vmem:[%s2040 + $0x38] sm:$0xff]
        %v2049 = vld [vmem:[%s2040 + $0x40] sm:$0xff]
        %v2050 = vld [vmem:[%s2040 + $0x48] sm:$0xff]
        %v2051 = vld [vmem:[%s2040 + $0x50] sm:$0xff]
        %v2052 = vld [vmem:[%s2040 + $0x58] sm:$0xff]
        %v2053 = vld [vmem:[%s2040 + $0x60] sm:$0xff]
        %v2054 = vld [vmem:[%s2040 + $0x68] sm:$0xff]
        %v2055 = vld [vmem:[%s2040 + $0x70] sm:$0xff]
        %v2056 = vld [vmem:[%s2040 + $0x78] sm:$0xff]
        %v2057 = vld [vmem:[%s2040 + $0x80] sm:$0xff]
        %v2058 = vld [vmem:[%s2040 + $0x88] sm:$0xff]
        %v2059 = vld [vmem:[%s2040 + $0x90] sm:$0xff]
        %v2060 = vld [vmem:[%s2040 + $0x98] sm:$0xff]
        %v2061 = vld [vmem:[%s2040 + $0xa0] sm:$0xff]
        %v2062 = vld [vmem:[%s2040 + $0xa8] sm:$0xff]
        %v2063 = vld [vmem:[%s2040 + $0xb0] sm:$0xff]
        %v2064 = vld [vmem:[%s2040 + $0xb8] sm:$0xff]
        %v2065 = vld [vmem:[%s2040 + $0xc0] sm:$0xff]
        %v2066 = vld [vmem:[%s2040 + $0xc8] sm:$0xff]
        %v2067 = vld [vmem:[%s2040 + $0xd0] sm:$0xff]
        %v2068 = vld [vmem:[%s2040 + $0xd8] sm:$0xff]
        %v2069 = vld [vmem:[%s2040 + $0xe0] sm:$0xff]
        %v2070 = vld [vmem:[%s2040 + $0xe8] sm:$0xff]
        %v2071 = vld [vmem:[%s2040 + $0xf0] sm:$0xff]
        %v2072 = vld [vmem:[%s2040 + $0xf8] sm:$0xff]
        %v2073 = vld [vmem:[%s2040 + $0x100] sm:$0xff]
        %v2074 = vld [vmem:[%s2040 + $0x108] sm:$0xff]
        %v2075 = vld [vmem:[%s2040 + $0x110] sm:$0xff]
        %v2076 = vld [vmem:[%s2040 + $0x118] sm:$0xff]
        %v2077 = vld [vmem:[%s2040 + $0x120] sm:$0xff]
        %v2078 = vld [vmem:[%s2040 + $0x128] sm:$0xff]
        %v2079 = vld [vmem:[%s2040 + $0x130] sm:$0xff]
        %v2080 = vld [vmem:[%s2040 + $0x138] sm:$0xff]
        %v2081 = vld [vmem:[%s2040 + $0x140] sm:$0xff]
        %v2082 = vld [vmem:[%s2040 + $0x148] sm:$0xff]
        %v2083 = vld [vmem:[%s2040 + $0x150] sm:$0xff]
        %v2084 = vld [vmem:[%s2040 + $0x158] sm:$0xff]
        %v2085 = vld [vmem:[%s2040 + $0x160] sm:$0xff]
        %v2086 = vld [vmem:[%s2040 + $0x168] sm:$0xff]
        %v2087 = vld [vmem:[%s2040 + $0x170] sm:$0xff]
        %v2088 = vld [vmem:[%s2040 + $0x178] sm:$0xff]
        %v2089 = vld [vmem:[%s2040 + $0x180] sm:$0xff]
        %v2090 = vld [vmem:[%s2040 + $0x188] sm:$0xff]
        %v2091 = vld [vmem:[%s2040 + $0x190] sm:$0xff]
        %v2092 = vld [vmem:[%s2040 + $0x198] sm:$0xff]
        %v2093 = vld [vmem:[%s2040 + $0x1a0] sm:$0xff]
        %v2094 = vld [vmem:[%s2040 + $0x1a8] sm:$0xff]
        %v2095 = vld [vmem:[%s2040 + $0x1b0] sm:$0xff]
        %v2096 = vld [vmem:[%s2040 + $0x1b8] sm:$0xff]
        %v2097 = vstv %s1719
        %v2098 = vmul.f32 %v2097, %v1874
        %v2099 = vmul.f32 %v2097, %v1876
        %v2100 = vmul.f32 %v2097, %v1880
        %v2101 = vmul.f32 %v2097, %v1882
        %v2102 = vmul.f32 %v2097, %v1886
        %v2103 = vmul.f32 %v2097, %v1888
        %v2104 = vmul.f32 %v2097, %v1892
        %v2105 = vmul.f32 %v2097, %v1894
        %v2106 = vmul.f32 %v2097, %v1898
        %v2107 = vmul.f32 %v2097, %v1900
        %v2108 = vmul.f32 %v2097, %v1904
        %v2109 = vmul.f32 %v2097, %v1906
        %v2110 = vmul.f32 %v2097, %v1910
        %v2111 = vmul.f32 %v2097, %v1912
        %v2112 = vmul.f32 %v2097, %v1916
        %v2113 = vmul.f32 %v2097, %v1918
        %v2114 = vmul.f32 %v2097, %v1922
        %v2115 = vmul.f32 %v2097, %v1924
        %v2116 = vmul.f32 %v2097, %v1928
        %v2117 = vmul.f32 %v2097, %v1930
        %v2118 = vmul.f32 %v2097, %v1934
        %v2119 = vmul.f32 %v2097, %v1936
        %v2120 = vmul.f32 %v2097, %v1940
        %v2121 = vmul.f32 %v2097, %v1942
        %v2122 = vmul.f32 %v2097, %v1946
        %v2123 = vmul.f32 %v2097, %v1948
        %v2124 = vmul.f32 %v2097, %v1952
        %v2125 = vmul.f32 %v2097, %v1954
        %v2126 = vmul.f32 %v2097, %v1958
        %v2127 = vmul.f32 %v2097, %v1960
        %v2128 = vmul.f32 %v2097, %v1964
        %v2129 = vmul.f32 %v2097, %v1966
        %v2130 = vmul.f32 %v2097, %v1970
        %v2131 = vmul.f32 %v2097, %v1972
        %v2132 = vmul.f32 %v2097, %v1976
        %v2133 = vmul.f32 %v2097, %v1978
        %v2134 = vmul.f32 %v2097, %v1982
        %v2135 = vmul.f32 %v2097, %v1984
        %v2136 = vmul.f32 %v2097, %v1988
        %v2137 = vmul.f32 %v2097, %v1990
        %v2138 = vmul.f32 %v2097, %v1994
        %v2139 = vmul.f32 %v2097, %v1996
        %v2140 = vmul.f32 %v2097, %v2000
        %v2141 = vmul.f32 %v2097, %v2002
        %v2142 = vmul.f32 %v2097, %v2006
        %v2143 = vmul.f32 %v2097, %v2008
        %v2144 = vmul.f32 %v2097, %v2012
        %v2145 = vmul.f32 %v2097, %v2014
        %v2146 = vmul.f32 %v2097, %v2018
        %v2147 = vmul.f32 %v2097, %v2020
        %v2148 = vmul.f32 %v2097, %v2024
        %v2149 = vmul.f32 %v2097, %v2026
        %v2150 = vmul.f32 %v2097, %v2030
        %v2151 = vmul.f32 %v2097, %v2032
        %v2152 = vmul.f32 %v2097, %v2036
        %v2153 = vmul.f32 %v2097, %v2038
        %v2154 = vmul.f32 %v831, %v2041
        %v2155 = vmul.f32 %v831, %v2042
        %v2156 = vmul.f32 %v831, %v2043
        %v2157 = vmul.f32 %v831, %v2044
        %v2158 = vmul.f32 %v831, %v2045
        %v2159 = vmul.f32 %v831, %v2046
        %v2160 = vmul.f32 %v831, %v2047
        %v2161 = vmul.f32 %v831, %v2048
        %v2162 = vmul.f32 %v831, %v2049
        %v2163 = vmul.f32 %v831, %v2050
        %v2164 = vmul.f32 %v831, %v2051
        %v2165 = vmul.f32 %v831, %v2052
        %v2166 = vmul.f32 %v831, %v2053
        %v2167 = vmul.f32 %v831, %v2054
        %v2168 = vmul.f32 %v831, %v2055
        %v2169 = vmul.f32 %v831, %v2056
        %v2170 = vmul.f32 %v831, %v2057
        %v2171 = vmul.f32 %v831, %v2058
        %v2172 = vmul.f32 %v831, %v2059
        %v2173 = vmul.f32 %v831, %v2060
        %v2174 = vmul.f32 %v831, %v2061
        %v2175 = vmul.f32 %v831, %v2062
        %v2176 = vmul.f32 %v831, %v2063
        %v2177 = vmul.f32 %v831, %v2064
        %v2178 = vmul.f32 %v831, %v2065
        %v2179 = vmul.f32 %v831, %v2066
        %v2180 = vmul.f32 %v831, %v2067
        %v2181 = vmul.f32 %v831, %v2068
        %v2182 = vmul.f32 %v831, %v2069
        %v2183 = vmul.f32 %v831, %v2070
        %v2184 = vmul.f32 %v831, %v2071
        %v2185 = vmul.f32 %v831, %v2072
        %v2186 = vmul.f32 %v831, %v2073
        %v2187 = vmul.f32 %v831, %v2074
        %v2188 = vmul.f32 %v831, %v2075
        %v2189 = vmul.f32 %v831, %v2076
        %v2190 = vmul.f32 %v831, %v2077
        %v2191 = vmul.f32 %v831, %v2078
        %v2192 = vmul.f32 %v831, %v2079
        %v2193 = vmul.f32 %v831, %v2080
        %v2194 = vmul.f32 %v831, %v2081
        %v2195 = vmul.f32 %v831, %v2082
        %v2196 = vmul.f32 %v831, %v2083
        %v2197 = vmul.f32 %v831, %v2084
        %v2198 = vmul.f32 %v831, %v2085
        %v2199 = vmul.f32 %v831, %v2086
        %v2200 = vmul.f32 %v831, %v2087
        %v2201 = vmul.f32 %v831, %v2088
        %v2202 = vmul.f32 %v831, %v2089
        %v2203 = vmul.f32 %v831, %v2090
        %v2204 = vmul.f32 %v831, %v2091
        %v2205 = vmul.f32 %v831, %v2092
        %v2206 = vmul.f32 %v831, %v2093
        %v2207 = vmul.f32 %v831, %v2094
        %v2208 = vmul.f32 %v831, %v2095
        %v2209 = vmul.f32 %v831, %v2096
        %v2210 = vadd.f32 %v2098, %v2154
        %v2211 = vadd.f32 %v2099, %v2155
        %v2212 = vadd.f32 %v2100, %v2156
        %v2213 = vadd.f32 %v2101, %v2157
        %v2214 = vadd.f32 %v2102, %v2158
        %v2215 = vadd.f32 %v2103, %v2159
        %v2216 = vadd.f32 %v2104, %v2160
        %v2217 = vadd.f32 %v2105, %v2161
        %v2218 = vadd.f32 %v2106, %v2162
        %v2219 = vadd.f32 %v2107, %v2163
        %v2220 = vadd.f32 %v2108, %v2164
        %v2221 = vadd.f32 %v2109, %v2165
        %v2222 = vadd.f32 %v2110, %v2166
        %v2223 = vadd.f32 %v2111, %v2167
        %v2224 = vadd.f32 %v2112, %v2168
        %v2225 = vadd.f32 %v2113, %v2169
        %v2226 = vadd.f32 %v2114, %v2170
        %v2227 = vadd.f32 %v2115, %v2171
        %v2228 = vadd.f32 %v2116, %v2172
        %v2229 = vadd.f32 %v2117, %v2173
        %v2230 = vadd.f32 %v2118, %v2174
        %v2231 = vadd.f32 %v2119, %v2175
        %v2232 = vadd.f32 %v2120, %v2176
        %v2233 = vadd.f32 %v2121, %v2177
        %v2234 = vadd.f32 %v2122, %v2178
        %v2235 = vadd.f32 %v2123, %v2179
        %v2236 = vadd.f32 %v2124, %v2180
        %v2237 = vadd.f32 %v2125, %v2181
        %v2238 = vadd.f32 %v2126, %v2182
        %v2239 = vadd.f32 %v2127, %v2183
        %v2240 = vadd.f32 %v2128, %v2184
        %v2241 = vadd.f32 %v2129, %v2185
        %v2242 = vadd.f32 %v2130, %v2186
        %v2243 = vadd.f32 %v2131, %v2187
        %v2244 = vadd.f32 %v2132, %v2188
        %v2245 = vadd.f32 %v2133, %v2189
        %v2246 = vadd.f32 %v2134, %v2190
        %v2247 = vadd.f32 %v2135, %v2191
        %v2248 = vadd.f32 %v2136, %v2192
        %v2249 = vadd.f32 %v2137, %v2193
        %v2250 = vadd.f32 %v2138, %v2194
        %v2251 = vadd.f32 %v2139, %v2195
        %v2252 = vadd.f32 %v2140, %v2196
        %v2253 = vadd.f32 %v2141, %v2197
        %v2254 = vadd.f32 %v2142, %v2198
        %v2255 = vadd.f32 %v2143, %v2199
        %v2256 = vadd.f32 %v2144, %v2200
        %v2257 = vadd.f32 %v2145, %v2201
        %v2258 = vadd.f32 %v2146, %v2202
        %v2259 = vadd.f32 %v2147, %v2203
        %v2260 = vadd.f32 %v2148, %v2204
        %v2261 = vadd.f32 %v2149, %v2205
        %v2262 = vadd.f32 %v2150, %v2206
        %v2263 = vadd.f32 %v2151, %v2207
        %v2264 = vadd.f32 %v2152, %v2208
        %v2265 = vadd.f32 %v2153, %v2209
        %v2266 = vstv %s1720
        %v2267 = vadd.f32 %v2210, %v2266
        %v2268 = vadd.f32 %v2211, %v2266
        %v2269 = vadd.f32 %v2212, %v2266
        %v2270 = vadd.f32 %v2213, %v2266
        %v2271 = vadd.f32 %v2214, %v2266
        %v2272 = vadd.f32 %v2215, %v2266
        %v2273 = vadd.f32 %v2216, %v2266
        %v2274 = vadd.f32 %v2217, %v2266
        %v2275 = vadd.f32 %v2218, %v2266
        %v2276 = vadd.f32 %v2219, %v2266
        %v2277 = vadd.f32 %v2220, %v2266
        %v2278 = vadd.f32 %v2221, %v2266
        %v2279 = vadd.f32 %v2222, %v2266
        %v2280 = vadd.f32 %v2223, %v2266
        %v2281 = vadd.f32 %v2224, %v2266
        %v2282 = vadd.f32 %v2225, %v2266
        %v2283 = vadd.f32 %v2226, %v2266
        %v2284 = vadd.f32 %v2227, %v2266
        %v2285 = vadd.f32 %v2228, %v2266
        %v2286 = vadd.f32 %v2229, %v2266
        %v2287 = vadd.f32 %v2230, %v2266
        %v2288 = vadd.f32 %v2231, %v2266
        %v2289 = vadd.f32 %v2232, %v2266
        %v2290 = vadd.f32 %v2233, %v2266
        %v2291 = vadd.f32 %v2234, %v2266
        %v2292 = vadd.f32 %v2235, %v2266
        %v2293 = vadd.f32 %v2236, %v2266
        %v2294 = vadd.f32 %v2237, %v2266
        %v2295 = vadd.f32 %v2238, %v2266
        %v2296 = vadd.f32 %v2239, %v2266
        %v2297 = vadd.f32 %v2240, %v2266
        %v2298 = vadd.f32 %v2241, %v2266
        %v2299 = vadd.f32 %v2242, %v2266
        %v2300 = vadd.f32 %v2243, %v2266
        %v2301 = vadd.f32 %v2244, %v2266
        %v2302 = vadd.f32 %v2245, %v2266
        %v2303 = vadd.f32 %v2246, %v2266
        %v2304 = vadd.f32 %v2247, %v2266
        %v2305 = vadd.f32 %v2248, %v2266
        %v2306 = vadd.f32 %v2249, %v2266
        %v2307 = vadd.f32 %v2250, %v2266
        %v2308 = vadd.f32 %v2251, %v2266
        %v2309 = vadd.f32 %v2252, %v2266
        %v2310 = vadd.f32 %v2253, %v2266
        %v2311 = vadd.f32 %v2254, %v2266
        %v2312 = vadd.f32 %v2255, %v2266
        %v2313 = vadd.f32 %v2256, %v2266
        %v2314 = vadd.f32 %v2257, %v2266
        %v2315 = vadd.f32 %v2258, %v2266
        %v2316 = vadd.f32 %v2259, %v2266
        %v2317 = vadd.f32 %v2260, %v2266
        %v2318 = vadd.f32 %v2261, %v2266
        %v2319 = vadd.f32 %v2262, %v2266
        %v2320 = vadd.f32 %v2263, %v2266
        %v2321 = vadd.f32 %v2264, %v2266
        %v2322 = vadd.f32 %v2265, %v2266
        %s2323 = scalar_lea.vmem %s278, 896 [#allocation11]
        %2324 = vst [vmem:[%s2323] sm:$0xff] %v2267
        %2325 = vst.msk [vmem:[%s2323 + $0x8] sm:$0xff] %vm1002, %v2268
        %2326 = vst [vmem:[%s2323 + $0x10] sm:$0xff] %v2269
        %2327 = vst.msk [vmem:[%s2323 + $0x18] sm:$0xff] %vm1002, %v2270
        %2328 = vst [vmem:[%s2323 + $0x20] sm:$0xff] %v2271
        %2329 = vst.msk [vmem:[%s2323 + $0x28] sm:$0xff] %vm1002, %v2272
        %2330 = vst [vmem:[%s2323 + $0x30] sm:$0xff] %v2273
        %2331 = vst.msk [vmem:[%s2323 + $0x38] sm:$0xff] %vm1002, %v2274
        %2332 = vst [vmem:[%s2323 + $0x40] sm:$0xff] %v2275
        %2333 = vst.msk [vmem:[%s2323 + $0x48] sm:$0xff] %vm1002, %v2276
        %2334 = vst [vmem:[%s2323 + $0x50] sm:$0xff] %v2277
        %2335 = vst.msk [vmem:[%s2323 + $0x58] sm:$0xff] %vm1002, %v2278
        %2336 = vst [vmem:[%s2323 + $0x60] sm:$0xff] %v2279
        %2337 = vst.msk [vmem:[%s2323 + $0x68] sm:$0xff] %vm1002, %v2280
        %2338 = vst [vmem:[%s2323 + $0x70] sm:$0xff] %v2281
        %2339 = vst.msk [vmem:[%s2323 + $0x78] sm:$0xff] %vm1002, %v2282
        %2340 = vst [vmem:[%s2323 + $0x80] sm:$0xff] %v2283
        %2341 = vst.msk [vmem:[%s2323 + $0x88] sm:$0xff] %vm1002, %v2284
        %2342 = vst [vmem:[%s2323 + $0x90] sm:$0xff] %v2285
        %2343 = vst.msk [vmem:[%s2323 + $0x98] sm:$0xff] %vm1002, %v2286
        %2344 = vst [vmem:[%s2323 + $0xa0] sm:$0xff] %v2287
        %2345 = vst.msk [vmem:[%s2323 + $0xa8] sm:$0xff] %vm1002, %v2288
        %2346 = vst [vmem:[%s2323 + $0xb0] sm:$0xff] %v2289
        %2347 = vst.msk [vmem:[%s2323 + $0xb8] sm:$0xff] %vm1002, %v2290
        %2348 = vst [vmem:[%s2323 + $0xc0] sm:$0xff] %v2291
        %2349 = vst.msk [vmem:[%s2323 + $0xc8] sm:$0xff] %vm1002, %v2292
        %2350 = vst [vmem:[%s2323 + $0xd0] sm:$0xff] %v2293
        %2351 = vst.msk [vmem:[%s2323 + $0xd8] sm:$0xff] %vm1002, %v2294
        %2352 = vst [vmem:[%s2323 + $0xe0] sm:$0xff] %v2295
        %2353 = vst.msk [vmem:[%s2323 + $0xe8] sm:$0xff] %vm1002, %v2296
        %2354 = vst [vmem:[%s2323 + $0xf0] sm:$0xff] %v2297
        %2355 = vst.msk [vmem:[%s2323 + $0xf8] sm:$0xff] %vm1002, %v2298
        %2356 = vst [vmem:[%s2323 + $0x100] sm:$0xff] %v2299
        %2357 = vst.msk [vmem:[%s2323 + $0x108] sm:$0xff] %vm1002, %v2300
        %2358 = vst [vmem:[%s2323 + $0x110] sm:$0xff] %v2301
        %2359 = vst.msk [vmem:[%s2323 + $0x118] sm:$0xff] %vm1002, %v2302
        %2360 = vst [vmem:[%s2323 + $0x120] sm:$0xff] %v2303
        %2361 = vst.msk [vmem:[%s2323 + $0x128] sm:$0xff] %vm1002, %v2304
        %2362 = vst [vmem:[%s2323 + $0x130] sm:$0xff] %v2305
        %2363 = vst.msk [vmem:[%s2323 + $0x138] sm:$0xff] %vm1002, %v2306
        %2364 = vst [vmem:[%s2323 + $0x140] sm:$0xff] %v2307
        %2365 = vst.msk [vmem:[%s2323 + $0x148] sm:$0xff] %vm1002, %v2308
        %2366 = vst [vmem:[%s2323 + $0x150] sm:$0xff] %v2309
        %2367 = vst.msk [vmem:[%s2323 + $0x158] sm:$0xff] %vm1002, %v2310
        %2368 = vst [vmem:[%s2323 + $0x160] sm:$0xff] %v2311
        %2369 = vst.msk [vmem:[%s2323 + $0x168] sm:$0xff] %vm1002, %v2312
        %2370 = vst [vmem:[%s2323 + $0x170] sm:$0xff] %v2313
        %2371 = vst.msk [vmem:[%s2323 + $0x178] sm:$0xff] %vm1002, %v2314
        %2372 = vst [vmem:[%s2323 + $0x180] sm:$0xff] %v2315
        %2373 = vst.msk [vmem:[%s2323 + $0x188] sm:$0xff] %vm1002, %v2316
        %2374 = vst [vmem:[%s2323 + $0x190] sm:$0xff] %v2317
        %2375 = vst.msk [vmem:[%s2323 + $0x198] sm:$0xff] %vm1002, %v2318
        %2376 = vst [vmem:[%s2323 + $0x1a0] sm:$0xff] %v2319
        %2377 = vst.msk [vmem:[%s2323 + $0x1a8] sm:$0xff] %vm1002, %v2320
        %2378 = vst [vmem:[%s2323 + $0x1b0] sm:$0xff] %v2321
        %2379 = vst.msk [vmem:[%s2323 + $0x1b8] sm:$0xff] %vm1002, %v2322
        %s2380 = sand.u32 %s134, 1
        %s2381 = scalar_lea.sflag [#allocation7], %s2380
        %s2382 = sand.u32 %s134, 1
        %s2383 = smul.addr %s2382, 1344
        %s2384 = scalar_lea.vmem [#allocation11], %s2383
        // Predicated region
        $region49: #{tpu_custom_call.1} parent=35 // pred_check
          %p2385 = pneg %p144
        $region50: #{tpu_custom_call.1} parent=35 // pred_check_branch
          %2387 = sbr.rel (%p2385) target = $region52
        $region51: #{tpu_custom_call.1} parent=35 // pred_region
          %s2389 = ssub.s32 21504, 21504
          %2390 = vsyncadd %s2381, %s2389
          %s2391 = smul.addr %s30, 168
          %s2392 = smul.addr %s2391, 128
          %s2393 = scalar_lea.hbm %s6, %s2392
          %s2394 = sshll.u32 %s2384, 4
          %s2395 = int_to_ptr.vmem [resolvable:$true] %s2394
          %2400 = dma.vmem_to_hbm [thread:$0]  %s2395, 21504, %s2393, %s2381, 256, 256, 16
        $region52: #{tpu_custom_call.1} parent=35 // pred_fallthru
          _
      $region36: #{tpu_custom_call.1} parent=5 // pred_fallthru
        _
      %p2401 = scmp.le.s32.totalorder 2, %s25
      // Predicated region
      $region53: #{tpu_custom_call.1} parent=5 // pred_check
        %p2402 = pneg %p2401
      $region54: #{tpu_custom_call.1} parent=5 // pred_check_branch
        %2404 = sbr.rel (%p2402) target = $region56
      $region55: #{tpu_custom_call.1} parent=5 // pred_region
        %s2405 = ssub.s32 %s25, 2
        // Predicated region
        $region57: #{tpu_custom_call.1} parent=55 // pred_check
          %p2406 = pneg %p150
        $region58: #{tpu_custom_call.1} parent=55 // pred_check_branch
          %2408 = sbr.rel (%p2406) target = $region60
        $region59: #{tpu_custom_call.1} parent=55 // pred_region
          %s2409 = sand.u32 %s135, 1
          %s2410 = scalar_lea.sflag [#allocation7], %s2409
          %s2411 = sand.u32 %s135, 1
          %s2412 = smul.addr %s2411, 1344
          %s2413 = scalar_lea.vmem [#allocation11], %s2412
          %2414 = dma.done %s2410, 21504
        $region60: #{tpu_custom_call.1} parent=55 // pred_fallthru
          _
      $region56: #{tpu_custom_call.1} parent=5 // pred_fallthru
        _
    $region6: #{tpu_custom_call.1} parent=1 // loop_footer
      %s29 = sadd.s32 1, %s25
    $region7: #{tpu_custom_call.1} parent=1 // loop_footer_branch
      %24 = sbr.rel target = $region3
    $region8: #{tpu_custom_call.1} parent=1 // loop_exit
      _
    %2415 = vsyncpa [#allocation6], 1
    %s2416 = scalar_lea.sflag [#allocation6], 1
    %2417 = vsyncpa %s2416, 1
    %2418 = vsyncpa [#allocation9], 1
    %2419 = vsyncpa [#allocation7], 1
    %s2420 = scalar_lea.sflag [#allocation7], 1
    %2421 = vsyncpa %s2420, 1

</llo_original>
